<compile_context>
chip_gen: v7x
topology: tpu7x:2x2x1
jax: 0.10.0
libtpu: 0.0.40
codegen_flags: <defaults>
</compile_context>

<pallas_src>
import functools

import numpy as np
import jax
import jax.numpy as jnp
from jax.experimental import pallas as pl
from jax.experimental.pallas import tpu as pltpu


def _flgc_kernel(x_ref, w_ref, o_ref, col_ref, *, K, Ho, Wo, Cin):
    """One batch element per grid step.

    x_ref  : (Hp, Wp, Cin)        zero-padded input (NHWC, batch squeezed)
    w_ref  : (Cout, K*K*Cin)      gating-folded, flattened conv weight
    o_ref  : (Cout, Ho*Wo)        output (lane-dense; maps onto NCHW)
    col_ref: (Ho, Wo, K*K*Cin)    VMEM im2col scratch
    """
    x = x_ref[...].astype(jnp.float32)

    # im2col: place each (kh, kw) tap into its static lane range of the
    # scratch.  K is small and static -> unrolled Python loop.
    for kh in range(K):
        for kw in range(K):
            c0 = (kh * K + kw) * Cin
            col_ref[:, :, c0:c0 + Cin] = x[kh:kh + Ho, kw:kw + Wo, :]

    patches = col_ref[...].reshape(Ho * Wo, K * K * Cin)   # (P, K*K*Cin)

    # out[o, p] = sum_k w[o, k] * patches[p, k]  -> (Cout, Ho*Wo), lane axis P.
    out = jax.lax.dot_general(
        w_ref[...].astype(jnp.float32), patches,
        dimension_numbers=(((1,), (1,)), ((), ())),
        preferred_element_type=jnp.float32)
    o_ref[...] = out.astype(o_ref.dtype)


def flgc_forward(x, conv_w, S, T, *, stride=1, padding=0, dilation=1):
    """x: (B, Cin, H, W) NCHW float32 -> (B, Cout, Ho, Wo) NCHW."""
    # TODO(synk): stride > 1 / dilation > 1 not implemented in the kernel path.
    assert stride == 1 and dilation == 1
    B, Cin, H, W = x.shape
    Cout, Cin2, K, K2 = conv_w.shape
    assert Cin2 == Cin and K2 == K

    Hp, Wp = H + 2 * padding, W + 2 * padding
    Ho, Wo = Hp - K + 1, Wp - K + 1

    # Fold the group gating into the weight (exact: the per-channel scales are
    # diagonal and commute with the convolution).  Done once, outside the grid.
    s_hat = jax.nn.softmax(S.astype(jnp.float32), axis=1)      # (Cin, G)
    t_hat = jax.nn.softmax(T.astype(jnp.float32), axis=1)      # (Cout, G)
    gate = jnp.dot(t_hat, s_hat.T)                             # (Cout, Cin)
    w_eff = conv_w.astype(jnp.float32) * gate[:, :, None, None]
    # (Cout, Cin, K, K) -> (Cout, K, K, Cin) -> (Cout, K*K*Cin); column order
    # (kh, kw, cin) matches the im2col layout built inside the kernel.
    w_col = jnp.transpose(w_eff, (0, 2, 3, 1)).reshape(Cout, K * K * Cin)

    # NHWC inside the kernel so Cin sits on the lane axis of the im2col.
    x_nhwc = jnp.transpose(x, (0, 2, 3, 1))
    x_pad = jnp.pad(x_nhwc, ((0, 0), (padding, padding), (padding, padding), (0, 0)))

    kernel = functools.partial(_flgc_kernel, K=K, Ho=Ho, Wo=Wo, Cin=Cin)

    # TODO(synk): for large realistic shapes (e.g. H=W=56, Cin/Cout>=256) add a
    # spatial-row and/or Cout grid axis so per-step blocks fit v7x's 64 MiB
    # VMEM; the whole-image-per-step block is sized for the toy config here.
    out = pl.pallas_call(
        kernel,
        out_shape=jax.ShapeDtypeStruct((B, Cout, Ho * Wo), x.dtype),
        grid_spec=pltpu.PrefetchScalarGridSpec(
            num_scalar_prefetch=0,
            grid=(B,),
            in_specs=[
                pl.BlockSpec((pl.Squeezed(), Hp, Wp, Cin), lambda b: (b, 0, 0, 0)),
                pl.BlockSpec((Cout, K * K * Cin), lambda b: (0, 0)),
            ],
            out_specs=pl.BlockSpec((pl.Squeezed(), Cout, Ho * Wo),
                                   lambda b: (b, 0, 0)),
            scratch_shapes=[pltpu.VMEM((Ho, Wo, K * K * Cin), jnp.float32)],
        ),
        compiler_params=pltpu.CompilerParams(
            dimension_semantics=("parallel",)),
    )(x_pad, w_col)

    # (B, Cout, Ho*Wo) is already NCHW up to a free reshape.
    return out.reshape(B, Cout, Ho, Wo)


def flgc_reference(x, conv_w, S, T, *, stride=1, padding=0, dilation=1):
    """Pure-JAX port of the PyTorch training-mode forward (ground truth)."""
    s_hat = jax.nn.softmax(S, axis=1)
    t_hat = jax.nn.softmax(T, axis=1)
    out = None
    for i in range(S.shape[1]):
        xi = x * s_hat[:, i][None, :, None, None]
        ti = conv_w * t_hat[:, i][:, None, None, None]
        yi = jax.lax.conv_general_dilated(
            xi, ti,
            window_strides=(stride, stride),
            padding=((padding, padding), (padding, padding)),
            rhs_dilation=(dilation, dilation),
            dimension_numbers=("NCHW", "OIHW", "NCHW"))
        out = yi if out is None else out + yi
    return out


if __name__ == "__main__":
    # Small deterministic configuration consistent with the module:
    # input_channel=4, output_channel=8, kernel_size=3, stride=1, padding=1,
    # dilation=1, group_num=2.
    B, Cin, Cout, H, W, K, G = 2, 4, 8, 16, 16, 3, 2
    padding = 1

    key = jax.random.PRNGKey(0)
    kx, kw, ks, kt = jax.random.split(key, 4)
    x = jax.random.normal(kx, (B, Cin, H, W), dtype=jnp.float32)
    conv_w = jax.random.normal(kw, (Cout, Cin, K, K), dtype=jnp.float32)
    S = jax.random.normal(ks, (Cin, G), dtype=jnp.float32)
    T = jax.random.normal(kt, (Cout, G), dtype=jnp.float32)

    out = flgc_forward(x, conv_w, S, T, stride=1, padding=padding, dilation=1)
    out = jax.block_until_ready(out)

    ref = flgc_reference(x, conv_w, S, T, stride=1, padding=padding, dilation=1)
    np.testing.assert_allclose(np.asarray(out), np.asarray(ref),
                               rtol=1e-3, atol=1e-3)

    print("KERNEL_OK")
</pallas_src>

<mosaic_0001>
module attributes {stable_mosaic.version = 11 : i64} {
  func.func @_flgc_kernel(%arg0: i32, %arg1: memref<1x18x18x4xf32, #tpu.memory_space<vmem>>, %arg2: memref<8x36xf32, #tpu.memory_space<vmem>>, %arg3: memref<1x8x256xf32, #tpu.memory_space<vmem>>, %arg4: memref<16x16x36xf32, #tpu.memory_space<vmem>>) attributes {dimension_semantics = [#tpu.dimension_semantics<parallel>], iteration_bounds = array<i64: 2>, scalar_prefetch = 0 : i64, scratch_operands = 1 : i64, tpu.core_type = #tpu.core_type<tc>, window_params = [{transform_indices = @transform_0, window_bounds = array<i64: 1, 18, 18, 4>}, {pipeline_mode = #tpu.pipeline_mode<synchronous>, transform_indices = @transform_1, window_bounds = array<i64: 8, 36>}, {transform_indices = @transform_2, window_bounds = array<i64: 1, 8, 256>}]} {
    %c0 = arith.constant 0 : index
    %c0_0 = arith.constant 0 : index
    %c0_1 = arith.constant 0 : index
    %c0_2 = arith.constant 0 : index
    %0 = vector.load %arg1[%c0, %c0_0, %c0_1, %c0_2] : memref<1x18x18x4xf32, #tpu.memory_space<vmem>>, vector<1x18x18x4xf32>
    %1 = vector.shape_cast %0 : vector<1x18x18x4xf32> to vector<18x18x4xf32>
    %2 = vector.extract_strided_slice %1 {offsets = [0, 0, 0], sizes = [16, 16, 4], strides = [1, 1, 1]} : vector<18x18x4xf32> to vector<16x16x4xf32>
    %c0_3 = arith.constant 0 : index
    %c0_4 = arith.constant 0 : index
    %c0_5 = arith.constant 0 : index
    %3 = vector.load %arg4[%c0_3, %c0_4, %c0_5] : memref<16x16x36xf32, #tpu.memory_space<vmem>>, vector<16x16x4xf32>
    tpu.vector_store %arg4[%c0_3, %c0_4, %c0_5], %2 {strides = array<i32>} : memref<16x16x36xf32, #tpu.memory_space<vmem>>, vector<16x16x4xf32>,
    %4 = vector.extract_strided_slice %1 {offsets = [0, 1, 0], sizes = [16, 16, 4], strides = [1, 1, 1]} : vector<18x18x4xf32> to vector<16x16x4xf32>
    %c0_6 = arith.constant 0 : index
    %c0_7 = arith.constant 0 : index
    %c4 = arith.constant 4 : index
    %5 = vector.load %arg4[%c0_6, %c0_7, %c4] : memref<16x16x36xf32, #tpu.memory_space<vmem>>, vector<16x16x4xf32>
    tpu.vector_store %arg4[%c0_6, %c0_7, %c4], %4 {strides = array<i32>} : memref<16x16x36xf32, #tpu.memory_space<vmem>>, vector<16x16x4xf32>,
    %6 = vector.extract_strided_slice %1 {offsets = [0, 2, 0], sizes = [16, 16, 4], strides = [1, 1, 1]} : vector<18x18x4xf32> to vector<16x16x4xf32>
    %c0_8 = arith.constant 0 : index
    %c0_9 = arith.constant 0 : index
    %c8 = arith.constant 8 : index
    %7 = vector.load %arg4[%c0_8, %c0_9, %c8] : memref<16x16x36xf32, #tpu.memory_space<vmem>>, vector<16x16x4xf32>
    tpu.vector_store %arg4[%c0_8, %c0_9, %c8], %6 {strides = array<i32>} : memref<16x16x36xf32, #tpu.memory_space<vmem>>, vector<16x16x4xf32>,
    %8 = vector.extract_strided_slice %1 {offsets = [1, 0, 0], sizes = [16, 16, 4], strides = [1, 1, 1]} : vector<18x18x4xf32> to vector<16x16x4xf32>
    %c0_10 = arith.constant 0 : index
    %c0_11 = arith.constant 0 : index
    %c12 = arith.constant 12 : index
    %9 = vector.load %arg4[%c0_10, %c0_11, %c12] : memref<16x16x36xf32, #tpu.memory_space<vmem>>, vector<16x16x4xf32>
    tpu.vector_store %arg4[%c0_10, %c0_11, %c12], %8 {strides = array<i32>} : memref<16x16x36xf32, #tpu.memory_space<vmem>>, vector<16x16x4xf32>,
    %10 = vector.extract_strided_slice %1 {offsets = [1, 1, 0], sizes = [16, 16, 4], strides = [1, 1, 1]} : vector<18x18x4xf32> to vector<16x16x4xf32>
    %c0_12 = arith.constant 0 : index
    %c0_13 = arith.constant 0 : index
    %c16 = arith.constant 16 : index
    %11 = vector.load %arg4[%c0_12, %c0_13, %c16] : memref<16x16x36xf32, #tpu.memory_space<vmem>>, vector<16x16x4xf32>
    tpu.vector_store %arg4[%c0_12, %c0_13, %c16], %10 {strides = array<i32>} : memref<16x16x36xf32, #tpu.memory_space<vmem>>, vector<16x16x4xf32>,
    %12 = vector.extract_strided_slice %1 {offsets = [1, 2, 0], sizes = [16, 16, 4], strides = [1, 1, 1]} : vector<18x18x4xf32> to vector<16x16x4xf32>
    %c0_14 = arith.constant 0 : index
    %c0_15 = arith.constant 0 : index
    %c20 = arith.constant 20 : index
    %13 = vector.load %arg4[%c0_14, %c0_15, %c20] : memref<16x16x36xf32, #tpu.memory_space<vmem>>, vector<16x16x4xf32>
    tpu.vector_store %arg4[%c0_14, %c0_15, %c20], %12 {strides = array<i32>} : memref<16x16x36xf32, #tpu.memory_space<vmem>>, vector<16x16x4xf32>,
    %14 = vector.extract_strided_slice %1 {offsets = [2, 0, 0], sizes = [16, 16, 4], strides = [1, 1, 1]} : vector<18x18x4xf32> to vector<16x16x4xf32>
    %c0_16 = arith.constant 0 : index
    %c0_17 = arith.constant 0 : index
    %c24 = arith.constant 24 : index
    %15 = vector.load %arg4[%c0_16, %c0_17, %c24] : memref<16x16x36xf32, #tpu.memory_space<vmem>>, vector<16x16x4xf32>
    tpu.vector_store %arg4[%c0_16, %c0_17, %c24], %14 {strides = array<i32>} : memref<16x16x36xf32, #tpu.memory_space<vmem>>, vector<16x16x4xf32>,
    %16 = vector.extract_strided_slice %1 {offsets = [2, 1, 0], sizes = [16, 16, 4], strides = [1, 1, 1]} : vector<18x18x4xf32> to vector<16x16x4xf32>
    %c0_18 = arith.constant 0 : index
    %c0_19 = arith.constant 0 : index
    %c28 = arith.constant 28 : index
    %17 = vector.load %arg4[%c0_18, %c0_19, %c28] : memref<16x16x36xf32, #tpu.memory_space<vmem>>, vector<16x16x4xf32>
    tpu.vector_store %arg4[%c0_18, %c0_19, %c28], %16 {strides = array<i32>} : memref<16x16x36xf32, #tpu.memory_space<vmem>>, vector<16x16x4xf32>,
    %18 = vector.extract_strided_slice %1 {offsets = [2, 2, 0], sizes = [16, 16, 4], strides = [1, 1, 1]} : vector<18x18x4xf32> to vector<16x16x4xf32>
    %c0_20 = arith.constant 0 : index
    %c0_21 = arith.constant 0 : index
    %c32 = arith.constant 32 : index
    %19 = vector.load %arg4[%c0_20, %c0_21, %c32] : memref<16x16x36xf32, #tpu.memory_space<vmem>>, vector<16x16x4xf32>
    tpu.vector_store %arg4[%c0_20, %c0_21, %c32], %18 {strides = array<i32>} : memref<16x16x36xf32, #tpu.memory_space<vmem>>, vector<16x16x4xf32>,
    %c0_22 = arith.constant 0 : index
    %c0_23 = arith.constant 0 : index
    %c0_24 = arith.constant 0 : index
    %20 = vector.load %arg4[%c0_22, %c0_23, %c0_24] : memref<16x16x36xf32, #tpu.memory_space<vmem>>, vector<16x16x36xf32>
    %21 = vector.shape_cast %20 : vector<16x16x36xf32> to vector<256x36xf32>
    %c0_25 = arith.constant 0 : index
    %c0_26 = arith.constant 0 : index
    %22 = vector.load %arg2[%c0_25, %c0_26] : memref<8x36xf32, #tpu.memory_space<vmem>>, vector<8x36xf32>
    %cst = arith.constant dense<0.000000e+00> : vector<8x256xf32>
    %23 = tpu.matmul %22, %21, %cst {dimension_numbers = #tpu.dot_dimension_numbers<[1], [1], [0], [0], [0, 0, 1, 0], [], []>} : vector<8x36xf32>, vector<256x36xf32>, vector<8x256xf32> -> vector<8x256xf32>
    %c0_27 = arith.constant 0 : index
    %c0_28 = arith.constant 0 : index
    %c0_29 = arith.constant 0 : index
    %24 = vector.load %arg3[%c0_27, %c0_28, %c0_29] : memref<1x8x256xf32, #tpu.memory_space<vmem>>, vector<1x8x256xf32>
    %25 = vector.shape_cast %24 : vector<1x8x256xf32> to vector<8x256xf32>
    %26 = vector.shape_cast %23 : vector<8x256xf32> to vector<1x8x256xf32>
    tpu.vector_store %arg3[%c0_27, %c0_28, %c0_29], %26 {strides = array<i32>} : memref<1x8x256xf32, #tpu.memory_space<vmem>>, vector<1x8x256xf32>,
    return
  }
  func.func @transform_0(%arg0: i32) -> (i32, i32, i32, i32) {
    %c0_i32 = arith.constant 0 : i32
    %c0_i32_0 = arith.constant 0 : i32
    %c0_i32_1 = arith.constant 0 : i32
    %c0_i32_2 = arith.constant 0 : i32
    return %arg0, %c0_i32, %c0_i32_0, %c0_i32_1 : i32, i32, i32, i32
  }
  func.func @transform_1(%arg0: i32) -> (i32, i32) {
    %c0_i32 = arith.constant 0 : i32
    %c0_i32_0 = arith.constant 0 : i32
    %c0_i32_1 = arith.constant 0 : i32
    return %c0_i32, %c0_i32_0 : i32, i32
  }
  func.func @transform_2(%arg0: i32) -> (i32, i32, i32) {
    %c0_i32 = arith.constant 0 : i32
    %c0_i32_0 = arith.constant 0 : i32
    %c0_i32_1 = arith.constant 0 : i32
    return %arg0, %c0_i32, %c0_i32_0 : i32, i32, i32
  }
}

</mosaic_0001>

<llo_original>
// kernel: tpu_custom_call.1
$region0: #{tpu_custom_call.1}
  #allocation0 [shape = 'u32[]', space=smem, size = 0x4, offset = 0x4, fixed_abs, tag = 'smem constant byte address 0x4 - core index']
  #allocation1 [shape = 'u32[144,128]{1,0:T(1,128)}', space=vmem, size = 0x12000, scoped, tag = 'internal scratch']
  #allocation2 [shape = 'f32[16,16,36]{2,1,0:T(8,128)}', space=vmem, size = 0x20000, scoped, tag = 'scratch operand']
  %s0 = inlined_call_operand.vmem [shape: f32[2,18,18,4], index: 0, kind: input, shape index: {}]
  %s1 = inlined_call_operand.vmem [shape: f32[8,36], index: 1, kind: input, shape index: {}]
  %s2 = inlined_call_operand.hbm [shape: f32[2,8,256], index: 2, kind: output, shape index: {}]
  %s3 = sld [smem:[#allocation0]]
  $region41: #{tpu_custom_call.1} parent=0
    _
  %s5 = ssub.s32 1, %s3
  %s6 = scalar_select 0, %s5, %s3
  $region1: #{tpu_custom_call.1} parent=0
    #allocation3 [shape = 'u8[16384]{0}', space=vmem, size = 0x4000, scoped, tag = 'output window, operand 0']
    #allocation4 [shape = 's32[2]{0}', space=sflag, size = 0x8, scoped, tag = 'scoped memory for tpu_custom_call.1']
    %7 = vsyncpa [#allocation4], 0
    %s8 = scalar_lea.sflag [#allocation4], 1
    %9 = vsyncpa %s8, 0
    loop: start=0, step=1, limit=4
    $region2: #{tpu_custom_call.1} parent=1 // loop_pre_header
      _
    $region3: #{tpu_custom_call.1} parent=1 // loop_header
      %s11 = sphi 0, %s15
      %p12 = scmp.ge.s32.totalorder %s11, 4
      %s21 = sphi 0, %s23
      %s24 = sphi 0, %s21
      %s25 = sphi 0, %s24
      %s41 = sphi 0, %s25
      %s45 = sphi 0, %s45
      %s47 = sphi 0, %s45
      %s48 = sphi 0, %s47
      %s62 = sphi 0, %s48
      %s68 = sphi 0, %s70
      %s71 = sphi 0, %s68
      %s72 = sphi 0, %s71
      %s88 = sphi 0, %s72
    $region4: #{tpu_custom_call.1} parent=1 // loop_header_branch
      %14 = sbr.rel (%p12) target = $region8
    $region5: #{tpu_custom_call.1} parent=1 // loop_body
      %s16 = ssub.s32 %s11, 1
      %s17 = ssub.s32 %s11, 2
      %s18 = sadd.s32 %s11, 1
      %s19 = ssub.s32 %s11, %s18
      %p20 = scmp.eq.s32.totalorder %s19, 0
      %s22 = sadd.s32 %s21, 1
      %s23 = scalar_select %p20, %s21, %s22
      %p26 = pneg %p20
      %p27 = scmp.eq.s32.totalorder %s11, 1
      %p28 = por %p26, %p27
      %p29 = scmp.ne.s32.totalorder %s21, %s24
      %p30 = scmp.eq.s32.totalorder %s11, 0
      %p31 = por %p29, %p30
      %p32 = scmp.ne.s32.totalorder %s21, %s24
      %p33 = scmp.eq.s32.totalorder %s16, 1
      %p34 = por %p32, %p33
      %p35 = scmp.ne.s32.totalorder %s24, %s25
      %p36 = scmp.eq.s32.totalorder %s16, 0
      %p37 = por %p35, %p36
      %p38 = scmp.ne.s32.totalorder %s24, %s25
      %p39 = scmp.eq.s32.totalorder %s17, 1
      %p40 = por %p38, %p39
      %p42 = scmp.ne.s32.totalorder %s25, %s41
      %p43 = scmp.eq.s32.totalorder %s17, 0
      %p44 = por %p42, %p43
      %s46 = sadd.s32 %s45, 1
      %p49 = scmp.eq.s32.totalorder %s11, 1
      %p50 = scmp.ne.s32.totalorder %s45, %s47
      %p51 = scmp.eq.s32.totalorder %s11, 0
      %p52 = por %p50, %p51
      %p53 = scmp.ne.s32.totalorder %s45, %s47
      %p54 = scmp.eq.s32.totalorder %s16, 1
      %p55 = por %p53, %p54
      %p56 = scmp.ne.s32.totalorder %s47, %s48
      %p57 = scmp.eq.s32.totalorder %s16, 0
      %p58 = por %p56, %p57
      %p59 = scmp.ne.s32.totalorder %s47, %s48
      %p60 = scmp.eq.s32.totalorder %s17, 1
      %p61 = por %p59, %p60
      %p63 = scmp.ne.s32.totalorder %s48, %s62
      %p64 = scmp.eq.s32.totalorder %s17, 0
      %p65 = por %p63, %p64
      %s66 = ssub.s32 %s11, %s18
      %p67 = scmp.eq.s32.totalorder %s66, 0
      %s69 = sadd.s32 %s68, 1
      %s70 = scalar_select %p67, %s68, %s69
      %p73 = pneg %p67
      %p74 = scmp.eq.s32.totalorder %s11, 1
      %p75 = por %p73, %p74
      %p76 = scmp.ne.s32.totalorder %s68, %s71
      %p77 = scmp.eq.s32.totalorder %s11, 0
      %p78 = por %p76, %p77
      %p79 = scmp.ne.s32.totalorder %s68, %s71
      %p80 = scmp.eq.s32.totalorder %s16, 1
      %p81 = por %p79, %p80
      %p82 = scmp.ne.s32.totalorder %s71, %s72
      %p83 = scmp.eq.s32.totalorder %s16, 0
      %p84 = por %p82, %p83
      %p85 = scmp.ne.s32.totalorder %s71, %s72
      %p86 = scmp.eq.s32.totalorder %s17, 1
      %p87 = por %p85, %p86
      %p89 = scmp.ne.s32.totalorder %s72, %s88
      %p90 = scmp.eq.s32.totalorder %s17, 0
      %p91 = por %p89, %p90
      %p92 = scmp.le.s32.totalorder 1, %s11
      %p93 = scmp.lt.s32.totalorder %s11, 3
      %p94 = pnand %p92, %p93
      %p95 = pneg %p94
      // Predicated region
      $region9: #{tpu_custom_call.1} parent=5 // pred_check
        _
      $region10: #{tpu_custom_call.1} parent=5 // pred_check_branch
        %97 = sbr.rel (%p94) target = $region12
      $region11: #{tpu_custom_call.1} parent=5 // pred_region
        %s98 = ssub.s32 %s11, 1
        // Predicated region
        $region13: #{tpu_custom_call.1} parent=11 // pred_check
          %p99 = pneg %p58
        $region14: #{tpu_custom_call.1} parent=11 // pred_check_branch
          %101 = sbr.rel (%p99) target = $region16
        $region15: #{tpu_custom_call.1} parent=11 // pred_region
          _
        $region16: #{tpu_custom_call.1} parent=11 // pred_fallthru
          _
      $region12: #{tpu_custom_call.1} parent=5 // pred_fallthru
        _
      %p102 = scmp.lt.s32.totalorder %s11, 2
      // Predicated region
      $region17: #{tpu_custom_call.1} parent=5 // pred_check
        %p103 = pneg %p102
      $region18: #{tpu_custom_call.1} parent=5 // pred_check_branch
        %105 = sbr.rel (%p103) target = $region20
      $region19: #{tpu_custom_call.1} parent=5 // pred_region
        // Predicated region
        $region21: #{tpu_custom_call.1} parent=19 // pred_check
          %p106 = pneg %p31
        $region22: #{tpu_custom_call.1} parent=19 // pred_check_branch
          %108 = sbr.rel (%p106) target = $region24
        $region23: #{tpu_custom_call.1} parent=19 // pred_region
          %p109 = scmp.lt.s32.totalorder %s11, 1
          %s110 = scalar_select %p109, %s11, 1
          %s111 = smul.addr %s110, 54
          %s112 = smul.addr %s111, 8
          %s113 = scalar_lea.vmem %s0, %s112
        $region24: #{tpu_custom_call.1} parent=19 // pred_fallthru
          _
      $region20: #{tpu_custom_call.1} parent=5 // pred_fallthru
        _
      %p114 = scmp.le.s32.totalorder 1, %s11
      %p115 = scmp.lt.s32.totalorder %s11, 3
      %p116 = pnand %p114, %p115
      %p117 = pneg %p116
      // Predicated region
      $region25: #{tpu_custom_call.1} parent=5 // pred_check
        _
      $region26: #{tpu_custom_call.1} parent=5 // pred_check_branch
        %119 = sbr.rel (%p116) target = $region28
      $region27: #{tpu_custom_call.1} parent=5 // pred_region
        %s120 = ssub.s32 %s11, 1
        %p121 = scmp.lt.s32.totalorder %s16, 1
        %s122 = scalar_select %p121, %s16, 1
        %s123 = smul.addr %s122, 54
        %s124 = smul.addr %s123, 8
        %s125 = scalar_lea.vmem %s0, %s124
        %p126 = pneg %p37
        %p127 = pneg %p34
        %p128 = pneg %p58
        %p129 = pneg %p55
        %p130 = pneg %p84
        %p131 = pneg %p81
        %s132 = sand.u32 %s71, 1
        %s133 = scalar_lea.sflag [#allocation4], %s132
        %s134 = sand.u32 %s71, 1
        %s135 = smul.addr %s134, 16
        %s136 = scalar_lea.vmem [#allocation3], %s135
        %p137 = scmp.lt.s32.totalorder %s16, 1
        %s138 = scalar_select %p137, %s16, 1
        %s139 = smul.addr %s138, 54
        %s140 = smul.addr %s139, 8
        %s141 = scalar_lea.vmem %s0, %s140
        %v142 = vld [vmem:[%s141] sm:$0xff]
        %v143 = vld [vmem:[%s141 + $0x8] sm:$0xff]
        %v144 = vld [vmem:[%s141 + $0x10] sm:$0x3]
        %v145 = vld [vmem:[%s141 + $0x18] sm:$0xff]
        %v146 = vld [vmem:[%s141 + $0x20] sm:$0xff]
        %v147 = vld [vmem:[%s141 + $0x28] sm:$0x3]
        %v148 = vld [vmem:[%s141 + $0x30] sm:$0xff]
        %v149 = vld [vmem:[%s141 + $0x38] sm:$0xff]
        %v150 = vld [vmem:[%s141 + $0x40] sm:$0x3]
        %v151 = vld [vmem:[%s141 + $0x48] sm:$0xff]
        %v152 = vld [vmem:[%s141 + $0x50] sm:$0xff]
        %v153 = vld [vmem:[%s141 + $0x58] sm:$0x3]
        %v154 = vld [vmem:[%s141 + $0x60] sm:$0xff]
        %v155 = vld [vmem:[%s141 + $0x68] sm:$0xff]
        %v156 = vld [vmem:[%s141 + $0x70] sm:$0x3]
        %v157 = vld [vmem:[%s141 + $0x78] sm:$0xff]
        %v158 = vld [vmem:[%s141 + $0x80] sm:$0xff]
        %v159 = vld [vmem:[%s141 + $0x88] sm:$0x3]
        %v160 = vld [vmem:[%s141 + $0x90] sm:$0xff]
        %v161 = vld [vmem:[%s141 + $0x98] sm:$0xff]
        %v162 = vld [vmem:[%s141 + $0xa0] sm:$0x3]
        %v163 = vld [vmem:[%s141 + $0xa8] sm:$0xff]
        %v164 = vld [vmem:[%s141 + $0xb0] sm:$0xff]
        %v165 = vld [vmem:[%s141 + $0xb8] sm:$0x3]
        %v166 = vld [vmem:[%s141 + $0xc0] sm:$0xff]
        %v167 = vld [vmem:[%s141 + $0xc8] sm:$0xff]
        %v168 = vld [vmem:[%s141 + $0xd0] sm:$0x3]
        %v169 = vld [vmem:[%s141 + $0xd8] sm:$0xff]
        %v170 = vld [vmem:[%s141 + $0xe0] sm:$0xff]
        %v171 = vld [vmem:[%s141 + $0xe8] sm:$0x3]
        %v172 = vld [vmem:[%s141 + $0xf0] sm:$0xff]
        %v173 = vld [vmem:[%s141 + $0xf8] sm:$0xff]
        %v174 = vld [vmem:[%s141 + $0x100] sm:$0x3]
        %v175 = vld [vmem:[%s141 + $0x108] sm:$0xff]
        %v176 = vld [vmem:[%s141 + $0x110] sm:$0xff]
        %v177 = vld [vmem:[%s141 + $0x118] sm:$0x3]
        %v178 = vld [vmem:[%s141 + $0x120] sm:$0xff]
        %v179 = vld [vmem:[%s141 + $0x128] sm:$0xff]
        %v180 = vld [vmem:[%s141 + $0x130] sm:$0x3]
        %v181 = vld [vmem:[%s141 + $0x138] sm:$0xff]
        %v182 = vld [vmem:[%s141 + $0x140] sm:$0xff]
        %v183 = vld [vmem:[%s141 + $0x148] sm:$0x3]
        %v184 = vld [vmem:[%s141 + $0x150] sm:$0xff]
        %v185 = vld [vmem:[%s141 + $0x158] sm:$0xff]
        %v186 = vld [vmem:[%s141 + $0x160] sm:$0x3]
        %v187 = vld [vmem:[%s141 + $0x168] sm:$0xff]
        %v188 = vld [vmem:[%s141 + $0x170] sm:$0xff]
        %v189 = vld [vmem:[%s141 + $0x178] sm:$0x3]
        %v190 = vld [vmem:[%s141 + $0x180] sm:$0xff]
        %v191 = vld [vmem:[%s141 + $0x188] sm:$0xff]
        %v192 = vld [vmem:[%s141 + $0x190] sm:$0x3]
        %v193 = vld [vmem:[%s141 + $0x198] sm:$0xff]
        %v194 = vld [vmem:[%s141 + $0x1a0] sm:$0xff]
        %v195 = vld [vmem:[%s141 + $0x1a8] sm:$0x3]
        %vm196 = vcmask 31744
        %197 = vst.msk [vmem:[#allocation2] sm:$0xff] %vm196, %v142
        %198 = vst.msk [vmem:[#allocation2 + $0x8] sm:$0xff] %vm196, %v143
        %199 = vst.msk [vmem:[#allocation2 + $0x10] sm:$0xff] %vm196, %v145
        %200 = vst.msk [vmem:[#allocation2 + $0x18] sm:$0xff] %vm196, %v146
        %201 = vst.msk [vmem:[#allocation2 + $0x20] sm:$0xff] %vm196, %v148
        %202 = vst.msk [vmem:[#allocation2 + $0x28] sm:$0xff] %vm196, %v149
        %203 = vst.msk [vmem:[#allocation2 + $0x30] sm:$0xff] %vm196, %v151
        %204 = vst.msk [vmem:[#allocation2 + $0x38] sm:$0xff] %vm196, %v152
        %205 = vst.msk [vmem:[#allocation2 + $0x40] sm:$0xff] %vm196, %v154
        %206 = vst.msk [vmem:[#allocation2 + $0x48] sm:$0xff] %vm196, %v155
        %207 = vst.msk [vmem:[#allocation2 + $0x50] sm:$0xff] %vm196, %v157
        %208 = vst.msk [vmem:[#allocation2 + $0x58] sm:$0xff] %vm196, %v158
        %209 = vst.msk [vmem:[#allocation2 + $0x60] sm:$0xff] %vm196, %v160
        %210 = vst.msk [vmem:[#allocation2 + $0x68] sm:$0xff] %vm196, %v161
        %211 = vst.msk [vmem:[#allocation2 + $0x70] sm:$0xff] %vm196, %v163
        %212 = vst.msk [vmem:[#allocation2 + $0x78] sm:$0xff] %vm196, %v164
        %213 = vst.msk [vmem:[#allocation2 + $0x80] sm:$0xff] %vm196, %v166
        %214 = vst.msk [vmem:[#allocation2 + $0x88] sm:$0xff] %vm196, %v167
        %215 = vst.msk [vmem:[#allocation2 + $0x90] sm:$0xff] %vm196, %v169
        %216 = vst.msk [vmem:[#allocation2 + $0x98] sm:$0xff] %vm196, %v170
        %217 = vst.msk [vmem:[#allocation2 + $0xa0] sm:$0xff] %vm196, %v172
        %218 = vst.msk [vmem:[#allocation2 + $0xa8] sm:$0xff] %vm196, %v173
        %219 = vst.msk [vmem:[#allocation2 + $0xb0] sm:$0xff] %vm196, %v175
        %220 = vst.msk [vmem:[#allocation2 + $0xb8] sm:$0xff] %vm196, %v176
        %221 = vst.msk [vmem:[#allocation2 + $0xc0] sm:$0xff] %vm196, %v178
        %222 = vst.msk [vmem:[#allocation2 + $0xc8] sm:$0xff] %vm196, %v179
        %223 = vst.msk [vmem:[#allocation2 + $0xd0] sm:$0xff] %vm196, %v181
        %224 = vst.msk [vmem:[#allocation2 + $0xd8] sm:$0xff] %vm196, %v182
        %225 = vst.msk [vmem:[#allocation2 + $0xe0] sm:$0xff] %vm196, %v184
        %226 = vst.msk [vmem:[#allocation2 + $0xe8] sm:$0xff] %vm196, %v185
        %227 = vst.msk [vmem:[#allocation2 + $0xf0] sm:$0xff] %vm196, %v187
        %228 = vst.msk [vmem:[#allocation2 + $0xf8] sm:$0xff] %vm196, %v188
        %277 = vrot.lane.b32.xlu0 %v142, 4
        %v278 = vpop.permute.xlu0 %277
        %279 = vrot.lane.b32.xlu0 %v143, 4
        %v280 = vpop.permute.xlu0 %279
        %281 = vrot.lane.b32.xlu0 %v144, 4
        %v282 = vpop.permute.xlu0 %281
        %283 = vrot.lane.b32.xlu0 %v145, 4
        %v284 = vpop.permute.xlu0 %283
        %285 = vrot.lane.b32.xlu0 %v146, 4
        %v286 = vpop.permute.xlu0 %285
        %287 = vrot.lane.b32.xlu0 %v147, 4
        %v288 = vpop.permute.xlu0 %287
        %289 = vrot.lane.b32.xlu0 %v148, 4
        %v290 = vpop.permute.xlu0 %289
        %291 = vrot.lane.b32.xlu0 %v149, 4
        %v292 = vpop.permute.xlu0 %291
        %293 = vrot.lane.b32.xlu0 %v150, 4
        %v294 = vpop.permute.xlu0 %293
        %295 = vrot.lane.b32.xlu0 %v151, 4
        %v296 = vpop.permute.xlu0 %295
        %297 = vrot.lane.b32.xlu0 %v152, 4
        %v298 = vpop.permute.xlu0 %297
        %299 = vrot.lane.b32.xlu0 %v153, 4
        %v300 = vpop.permute.xlu0 %299
        %301 = vrot.lane.b32.xlu0 %v154, 4
        %v302 = vpop.permute.xlu0 %301
        %303 = vrot.lane.b32.xlu0 %v155, 4
        %v304 = vpop.permute.xlu0 %303
        %305 = vrot.lane.b32.xlu0 %v156, 4
        %v306 = vpop.permute.xlu0 %305
        %307 = vrot.lane.b32.xlu0 %v157, 4
        %v308 = vpop.permute.xlu0 %307
        %309 = vrot.lane.b32.xlu0 %v158, 4
        %v310 = vpop.permute.xlu0 %309
        %311 = vrot.lane.b32.xlu0 %v159, 4
        %v312 = vpop.permute.xlu0 %311
        %313 = vrot.lane.b32.xlu0 %v160, 4
        %v314 = vpop.permute.xlu0 %313
        %315 = vrot.lane.b32.xlu0 %v161, 4
        %v316 = vpop.permute.xlu0 %315
        %317 = vrot.lane.b32.xlu0 %v162, 4
        %v318 = vpop.permute.xlu0 %317
        %319 = vrot.lane.b32.xlu0 %v163, 4
        %v320 = vpop.permute.xlu0 %319
        %321 = vrot.lane.b32.xlu0 %v164, 4
        %v322 = vpop.permute.xlu0 %321
        %323 = vrot.lane.b32.xlu0 %v165, 4
        %v324 = vpop.permute.xlu0 %323
        %325 = vrot.lane.b32.xlu0 %v166, 4
        %v326 = vpop.permute.xlu0 %325
        %327 = vrot.lane.b32.xlu0 %v167, 4
        %v328 = vpop.permute.xlu0 %327
        %329 = vrot.lane.b32.xlu0 %v168, 4
        %v330 = vpop.permute.xlu0 %329
        %331 = vrot.lane.b32.xlu0 %v169, 4
        %v332 = vpop.permute.xlu0 %331
        %333 = vrot.lane.b32.xlu0 %v170, 4
        %v334 = vpop.permute.xlu0 %333
        %335 = vrot.lane.b32.xlu0 %v171, 4
        %v336 = vpop.permute.xlu0 %335
        %337 = vrot.lane.b32.xlu0 %v172, 4
        %v338 = vpop.permute.xlu0 %337
        %339 = vrot.lane.b32.xlu0 %v173, 4
        %v340 = vpop.permute.xlu0 %339
        %341 = vrot.lane.b32.xlu0 %v174, 4
        %v342 = vpop.permute.xlu0 %341
        %343 = vrot.lane.b32.xlu0 %v175, 4
        %v344 = vpop.permute.xlu0 %343
        %345 = vrot.lane.b32.xlu0 %v176, 4
        %v346 = vpop.permute.xlu0 %345
        %347 = vrot.lane.b32.xlu0 %v177, 4
        %v348 = vpop.permute.xlu0 %347
        %349 = vrot.lane.b32.xlu0 %v178, 4
        %v350 = vpop.permute.xlu0 %349
        %351 = vrot.lane.b32.xlu0 %v179, 4
        %v352 = vpop.permute.xlu0 %351
        %353 = vrot.lane.b32.xlu0 %v180, 4
        %v354 = vpop.permute.xlu0 %353
        %355 = vrot.lane.b32.xlu0 %v181, 4
        %v356 = vpop.permute.xlu0 %355
        %357 = vrot.lane.b32.xlu0 %v182, 4
        %v358 = vpop.permute.xlu0 %357
        %359 = vrot.lane.b32.xlu0 %v183, 4
        %v360 = vpop.permute.xlu0 %359
        %361 = vrot.lane.b32.xlu0 %v184, 4
        %v362 = vpop.permute.xlu0 %361
        %363 = vrot.lane.b32.xlu0 %v185, 4
        %v364 = vpop.permute.xlu0 %363
        %365 = vrot.lane.b32.xlu0 %v186, 4
        %v366 = vpop.permute.xlu0 %365
        %367 = vrot.lane.b32.xlu0 %v187, 4
        %v368 = vpop.permute.xlu0 %367
        %369 = vrot.lane.b32.xlu0 %v188, 4
        %v370 = vpop.permute.xlu0 %369
        %371 = vrot.lane.b32.xlu0 %v189, 4
        %v372 = vpop.permute.xlu0 %371
        %vm421 = vcmask 64545
        %422 = vst.msk [vmem:[#allocation2 - $0x1] sm:$0xfe] %vm421, %v278
        %vm423 = vcmask 64544
        %424 = vst.msk [vmem:[#allocation2 + $0x7] sm:$0xff] %vm423, %v280
        %vm425 = vcmask 57376
        %426 = vst.msk [vmem:[#allocation2 + $0xf] sm:$0x1] %vm425, %v282
        %427 = vst.msk [vmem:[#allocation2 + $0xf] sm:$0xfe] %vm421, %v284
        %428 = vst.msk [vmem:[#allocation2 + $0x17] sm:$0xff] %vm423, %v286
        %429 = vst.msk [vmem:[#allocation2 + $0x1f] sm:$0x1] %vm425, %v288
        %430 = vst.msk [vmem:[#allocation2 + $0x1f] sm:$0xfe] %vm421, %v290
        %431 = vst.msk [vmem:[#allocation2 + $0x27] sm:$0xff] %vm423, %v292
        %432 = vst.msk [vmem:[#allocation2 + $0x2f] sm:$0x1] %vm425, %v294
        %433 = vst.msk [vmem:[#allocation2 + $0x2f] sm:$0xfe] %vm421, %v296
        %434 = vst.msk [vmem:[#allocation2 + $0x37] sm:$0xff] %vm423, %v298
        %435 = vst.msk [vmem:[#allocation2 + $0x3f] sm:$0x1] %vm425, %v300
        %436 = vst.msk [vmem:[#allocation2 + $0x3f] sm:$0xfe] %vm421, %v302
        %437 = vst.msk [vmem:[#allocation2 + $0x47] sm:$0xff] %vm423, %v304
        %438 = vst.msk [vmem:[#allocation2 + $0x4f] sm:$0x1] %vm425, %v306
        %439 = vst.msk [vmem:[#allocation2 + $0x4f] sm:$0xfe] %vm421, %v308
        %440 = vst.msk [vmem:[#allocation2 + $0x57] sm:$0xff] %vm423, %v310
        %441 = vst.msk [vmem:[#allocation2 + $0x5f] sm:$0x1] %vm425, %v312
        %442 = vst.msk [vmem:[#allocation2 + $0x5f] sm:$0xfe] %vm421, %v314
        %443 = vst.msk [vmem:[#allocation2 + $0x67] sm:$0xff] %vm423, %v316
        %444 = vst.msk [vmem:[#allocation2 + $0x6f] sm:$0x1] %vm425, %v318
        %445 = vst.msk [vmem:[#allocation2 + $0x6f] sm:$0xfe] %vm421, %v320
        %446 = vst.msk [vmem:[#allocation2 + $0x77] sm:$0xff] %vm423, %v322
        %447 = vst.msk [vmem:[#allocation2 + $0x7f] sm:$0x1] %vm425, %v324
        %448 = vst.msk [vmem:[#allocation2 + $0x7f] sm:$0xfe] %vm421, %v326
        %449 = vst.msk [vmem:[#allocation2 + $0x87] sm:$0xff] %vm423, %v328
        %450 = vst.msk [vmem:[#allocation2 + $0x8f] sm:$0x1] %vm425, %v330
        %451 = vst.msk [vmem:[#allocation2 + $0x8f] sm:$0xfe] %vm421, %v332
        %452 = vst.msk [vmem:[#allocation2 + $0x97] sm:$0xff] %vm423, %v334
        %453 = vst.msk [vmem:[#allocation2 + $0x9f] sm:$0x1] %vm425, %v336
        %454 = vst.msk [vmem:[#allocation2 + $0x9f] sm:$0xfe] %vm421, %v338
        %455 = vst.msk [vmem:[#allocation2 + $0xa7] sm:$0xff] %vm423, %v340
        %456 = vst.msk [vmem:[#allocation2 + $0xaf] sm:$0x1] %vm425, %v342
        %457 = vst.msk [vmem:[#allocation2 + $0xaf] sm:$0xfe] %vm421, %v344
        %458 = vst.msk [vmem:[#allocation2 + $0xb7] sm:$0xff] %vm423, %v346
        %459 = vst.msk [vmem:[#allocation2 + $0xbf] sm:$0x1] %vm425, %v348
        %460 = vst.msk [vmem:[#allocation2 + $0xbf] sm:$0xfe] %vm421, %v350
        %461 = vst.msk [vmem:[#allocation2 + $0xc7] sm:$0xff] %vm423, %v352
        %462 = vst.msk [vmem:[#allocation2 + $0xcf] sm:$0x1] %vm425, %v354
        %463 = vst.msk [vmem:[#allocation2 + $0xcf] sm:$0xfe] %vm421, %v356
        %464 = vst.msk [vmem:[#allocation2 + $0xd7] sm:$0xff] %vm423, %v358
        %465 = vst.msk [vmem:[#allocation2 + $0xdf] sm:$0x1] %vm425, %v360
        %466 = vst.msk [vmem:[#allocation2 + $0xdf] sm:$0xfe] %vm421, %v362
        %467 = vst.msk [vmem:[#allocation2 + $0xe7] sm:$0xff] %vm423, %v364
        %468 = vst.msk [vmem:[#allocation2 + $0xef] sm:$0x1] %vm425, %v366
        %469 = vst.msk [vmem:[#allocation2 + $0xef] sm:$0xfe] %vm421, %v368
        %470 = vst.msk [vmem:[#allocation2 + $0xf7] sm:$0xff] %vm423, %v370
        %471 = vst.msk [vmem:[#allocation2 + $0xff] sm:$0x1] %vm425, %v372
        %472 = vrot.lane.b32.xlu0 %v142, 8
        %v473 = vpop.permute.xlu0 %472
        %474 = vrot.lane.b32.xlu0 %v143, 8
        %v475 = vpop.permute.xlu0 %474
        %476 = vrot.lane.b32.xlu0 %v144, 8
        %v477 = vpop.permute.xlu0 %476
        %478 = vrot.lane.b32.xlu0 %v145, 8
        %v479 = vpop.permute.xlu0 %478
        %480 = vrot.lane.b32.xlu0 %v146, 8
        %v481 = vpop.permute.xlu0 %480
        %482 = vrot.lane.b32.xlu0 %v147, 8
        %v483 = vpop.permute.xlu0 %482
        %484 = vrot.lane.b32.xlu0 %v148, 8
        %v485 = vpop.permute.xlu0 %484
        %486 = vrot.lane.b32.xlu0 %v149, 8
        %v487 = vpop.permute.xlu0 %486
        %488 = vrot.lane.b32.xlu0 %v150, 8
        %v489 = vpop.permute.xlu0 %488
        %490 = vrot.lane.b32.xlu0 %v151, 8
        %v491 = vpop.permute.xlu0 %490
        %492 = vrot.lane.b32.xlu0 %v152, 8
        %v493 = vpop.permute.xlu0 %492
        %494 = vrot.lane.b32.xlu0 %v153, 8
        %v495 = vpop.permute.xlu0 %494
        %496 = vrot.lane.b32.xlu0 %v154, 8
        %v497 = vpop.permute.xlu0 %496
        %498 = vrot.lane.b32.xlu0 %v155, 8
        %v499 = vpop.permute.xlu0 %498
        %500 = vrot.lane.b32.xlu0 %v156, 8
        %v501 = vpop.permute.xlu0 %500
        %502 = vrot.lane.b32.xlu0 %v157, 8
        %v503 = vpop.permute.xlu0 %502
        %504 = vrot.lane.b32.xlu0 %v158, 8
        %v505 = vpop.permute.xlu0 %504
        %506 = vrot.lane.b32.xlu0 %v159, 8
        %v507 = vpop.permute.xlu0 %506
        %508 = vrot.lane.b32.xlu0 %v160, 8
        %v509 = vpop.permute.xlu0 %508
        %510 = vrot.lane.b32.xlu0 %v161, 8
        %v511 = vpop.permute.xlu0 %510
        %512 = vrot.lane.b32.xlu0 %v162, 8
        %v513 = vpop.permute.xlu0 %512
        %514 = vrot.lane.b32.xlu0 %v163, 8
        %v515 = vpop.permute.xlu0 %514
        %516 = vrot.lane.b32.xlu0 %v164, 8
        %v517 = vpop.permute.xlu0 %516
        %518 = vrot.lane.b32.xlu0 %v165, 8
        %v519 = vpop.permute.xlu0 %518
        %520 = vrot.lane.b32.xlu0 %v166, 8
        %v521 = vpop.permute.xlu0 %520
        %522 = vrot.lane.b32.xlu0 %v167, 8
        %v523 = vpop.permute.xlu0 %522
        %524 = vrot.lane.b32.xlu0 %v168, 8
        %v525 = vpop.permute.xlu0 %524
        %526 = vrot.lane.b32.xlu0 %v169, 8
        %v527 = vpop.permute.xlu0 %526
        %528 = vrot.lane.b32.xlu0 %v170, 8
        %v529 = vpop.permute.xlu0 %528
        %530 = vrot.lane.b32.xlu0 %v171, 8
        %v531 = vpop.permute.xlu0 %530
        %532 = vrot.lane.b32.xlu0 %v172, 8
        %v533 = vpop.permute.xlu0 %532
        %534 = vrot.lane.b32.xlu0 %v173, 8
        %v535 = vpop.permute.xlu0 %534
        %536 = vrot.lane.b32.xlu0 %v174, 8
        %v537 = vpop.permute.xlu0 %536
        %538 = vrot.lane.b32.xlu0 %v175, 8
        %v539 = vpop.permute.xlu0 %538
        %540 = vrot.lane.b32.xlu0 %v176, 8
        %v541 = vpop.permute.xlu0 %540
        %542 = vrot.lane.b32.xlu0 %v177, 8
        %v543 = vpop.permute.xlu0 %542
        %544 = vrot.lane.b32.xlu0 %v178, 8
        %v545 = vpop.permute.xlu0 %544
        %546 = vrot.lane.b32.xlu0 %v179, 8
        %v547 = vpop.permute.xlu0 %546
        %548 = vrot.lane.b32.xlu0 %v180, 8
        %v549 = vpop.permute.xlu0 %548
        %550 = vrot.lane.b32.xlu0 %v181, 8
        %v551 = vpop.permute.xlu0 %550
        %552 = vrot.lane.b32.xlu0 %v182, 8
        %v553 = vpop.permute.xlu0 %552
        %554 = vrot.lane.b32.xlu0 %v183, 8
        %v555 = vpop.permute.xlu0 %554
        %556 = vrot.lane.b32.xlu0 %v184, 8
        %v557 = vpop.permute.xlu0 %556
        %558 = vrot.lane.b32.xlu0 %v185, 8
        %v559 = vpop.permute.xlu0 %558
        %560 = vrot.lane.b32.xlu0 %v186, 8
        %v561 = vpop.permute.xlu0 %560
        %562 = vrot.lane.b32.xlu0 %v187, 8
        %v563 = vpop.permute.xlu0 %562
        %564 = vrot.lane.b32.xlu0 %v188, 8
        %v565 = vpop.permute.xlu0 %564
        %566 = vrot.lane.b32.xlu0 %v189, 8
        %v567 = vpop.permute.xlu0 %566
        %vm616 = vcmask 97346
        %617 = vst.msk [vmem:[#allocation2 - $0x2] sm:$0xfc] %vm616, %v473
        %vm618 = vcmask 97344
        %619 = vst.msk [vmem:[#allocation2 + $0x6] sm:$0xff] %vm618, %v475
        %vm620 = vcmask 91200
        %621 = vst.msk [vmem:[#allocation2 + $0xe] sm:$0x3] %vm620, %v477
        %622 = vst.msk [vmem:[#allocation2 + $0xe] sm:$0xfc] %vm616, %v479
        %623 = vst.msk [vmem:[#allocation2 + $0x16] sm:$0xff] %vm618, %v481
        %624 = vst.msk [vmem:[#allocation2 + $0x1e] sm:$0x3] %vm620, %v483
        %625 = vst.msk [vmem:[#allocation2 + $0x1e] sm:$0xfc] %vm616, %v485
        %626 = vst.msk [vmem:[#allocation2 + $0x26] sm:$0xff] %vm618, %v487
        %627 = vst.msk [vmem:[#allocation2 + $0x2e] sm:$0x3] %vm620, %v489
        %628 = vst.msk [vmem:[#allocation2 + $0x2e] sm:$0xfc] %vm616, %v491
        %629 = vst.msk [vmem:[#allocation2 + $0x36] sm:$0xff] %vm618, %v493
        %630 = vst.msk [vmem:[#allocation2 + $0x3e] sm:$0x3] %vm620, %v495
        %631 = vst.msk [vmem:[#allocation2 + $0x3e] sm:$0xfc] %vm616, %v497
        %632 = vst.msk [vmem:[#allocation2 + $0x46] sm:$0xff] %vm618, %v499
        %633 = vst.msk [vmem:[#allocation2 + $0x4e] sm:$0x3] %vm620, %v501
        %634 = vst.msk [vmem:[#allocation2 + $0x4e] sm:$0xfc] %vm616, %v503
        %635 = vst.msk [vmem:[#allocation2 + $0x56] sm:$0xff] %vm618, %v505
        %636 = vst.msk [vmem:[#allocation2 + $0x5e] sm:$0x3] %vm620, %v507
        %637 = vst.msk [vmem:[#allocation2 + $0x5e] sm:$0xfc] %vm616, %v509
        %638 = vst.msk [vmem:[#allocation2 + $0x66] sm:$0xff] %vm618, %v511
        %639 = vst.msk [vmem:[#allocation2 + $0x6e] sm:$0x3] %vm620, %v513
        %640 = vst.msk [vmem:[#allocation2 + $0x6e] sm:$0xfc] %vm616, %v515
        %641 = vst.msk [vmem:[#allocation2 + $0x76] sm:$0xff] %vm618, %v517
        %642 = vst.msk [vmem:[#allocation2 + $0x7e] sm:$0x3] %vm620, %v519
        %643 = vst.msk [vmem:[#allocation2 + $0x7e] sm:$0xfc] %vm616, %v521
        %644 = vst.msk [vmem:[#allocation2 + $0x86] sm:$0xff] %vm618, %v523
        %645 = vst.msk [vmem:[#allocation2 + $0x8e] sm:$0x3] %vm620, %v525
        %646 = vst.msk [vmem:[#allocation2 + $0x8e] sm:$0xfc] %vm616, %v527
        %647 = vst.msk [vmem:[#allocation2 + $0x96] sm:$0xff] %vm618, %v529
        %648 = vst.msk [vmem:[#allocation2 + $0x9e] sm:$0x3] %vm620, %v531
        %649 = vst.msk [vmem:[#allocation2 + $0x9e] sm:$0xfc] %vm616, %v533
        %650 = vst.msk [vmem:[#allocation2 + $0xa6] sm:$0xff] %vm618, %v535
        %651 = vst.msk [vmem:[#allocation2 + $0xae] sm:$0x3] %vm620, %v537
        %652 = vst.msk [vmem:[#allocation2 + $0xae] sm:$0xfc] %vm616, %v539
        %653 = vst.msk [vmem:[#allocation2 + $0xb6] sm:$0xff] %vm618, %v541
        %654 = vst.msk [vmem:[#allocation2 + $0xbe] sm:$0x3] %vm620, %v543
        %655 = vst.msk [vmem:[#allocation2 + $0xbe] sm:$0xfc] %vm616, %v545
        %656 = vst.msk [vmem:[#allocation2 + $0xc6] sm:$0xff] %vm618, %v547
        %657 = vst.msk [vmem:[#allocation2 + $0xce] sm:$0x3] %vm620, %v549
        %658 = vst.msk [vmem:[#allocation2 + $0xce] sm:$0xfc] %vm616, %v551
        %659 = vst.msk [vmem:[#allocation2 + $0xd6] sm:$0xff] %vm618, %v553
        %660 = vst.msk [vmem:[#allocation2 + $0xde] sm:$0x3] %vm620, %v555
        %661 = vst.msk [vmem:[#allocation2 + $0xde] sm:$0xfc] %vm616, %v557
        %662 = vst.msk [vmem:[#allocation2 + $0xe6] sm:$0xff] %vm618, %v559
        %663 = vst.msk [vmem:[#allocation2 + $0xee] sm:$0x3] %vm620, %v561
        %664 = vst.msk [vmem:[#allocation2 + $0xee] sm:$0xfc] %vm616, %v563
        %665 = vst.msk [vmem:[#allocation2 + $0xf6] sm:$0xff] %vm618, %v565
        %666 = vst.msk [vmem:[#allocation2 + $0xfe] sm:$0x3] %vm620, %v567
        %669 = vrot.lane.b32.xlu0 %v145, 12
        %v670 = vpop.permute.xlu0 %669
        %671 = vrot.lane.b32.xlu0 %v146, 12
        %v672 = vpop.permute.xlu0 %671
        %673 = vrot.lane.b32.xlu0 %v148, 12
        %v674 = vpop.permute.xlu0 %673
        %675 = vrot.lane.b32.xlu0 %v149, 12
        %v676 = vpop.permute.xlu0 %675
        %677 = vrot.lane.b32.xlu0 %v151, 12
        %v678 = vpop.permute.xlu0 %677
        %679 = vrot.lane.b32.xlu0 %v152, 12
        %v680 = vpop.permute.xlu0 %679
        %681 = vrot.lane.b32.xlu0 %v154, 12
        %v682 = vpop.permute.xlu0 %681
        %683 = vrot.lane.b32.xlu0 %v155, 12
        %v684 = vpop.permute.xlu0 %683
        %685 = vrot.lane.b32.xlu0 %v157, 12
        %v686 = vpop.permute.xlu0 %685
        %687 = vrot.lane.b32.xlu0 %v158, 12
        %v688 = vpop.permute.xlu0 %687
        %689 = vrot.lane.b32.xlu0 %v160, 12
        %v690 = vpop.permute.xlu0 %689
        %691 = vrot.lane.b32.xlu0 %v161, 12
        %v692 = vpop.permute.xlu0 %691
        %693 = vrot.lane.b32.xlu0 %v163, 12
        %v694 = vpop.permute.xlu0 %693
        %695 = vrot.lane.b32.xlu0 %v164, 12
        %v696 = vpop.permute.xlu0 %695
        %697 = vrot.lane.b32.xlu0 %v166, 12
        %v698 = vpop.permute.xlu0 %697
        %699 = vrot.lane.b32.xlu0 %v167, 12
        %v700 = vpop.permute.xlu0 %699
        %701 = vrot.lane.b32.xlu0 %v169, 12
        %v702 = vpop.permute.xlu0 %701
        %703 = vrot.lane.b32.xlu0 %v170, 12
        %v704 = vpop.permute.xlu0 %703
        %705 = vrot.lane.b32.xlu0 %v172, 12
        %v706 = vpop.permute.xlu0 %705
        %707 = vrot.lane.b32.xlu0 %v173, 12
        %v708 = vpop.permute.xlu0 %707
        %709 = vrot.lane.b32.xlu0 %v175, 12
        %v710 = vpop.permute.xlu0 %709
        %711 = vrot.lane.b32.xlu0 %v176, 12
        %v712 = vpop.permute.xlu0 %711
        %713 = vrot.lane.b32.xlu0 %v178, 12
        %v714 = vpop.permute.xlu0 %713
        %715 = vrot.lane.b32.xlu0 %v179, 12
        %v716 = vpop.permute.xlu0 %715
        %717 = vrot.lane.b32.xlu0 %v181, 12
        %v718 = vpop.permute.xlu0 %717
        %719 = vrot.lane.b32.xlu0 %v182, 12
        %v720 = vpop.permute.xlu0 %719
        %721 = vrot.lane.b32.xlu0 %v184, 12
        %v722 = vpop.permute.xlu0 %721
        %723 = vrot.lane.b32.xlu0 %v185, 12
        %v724 = vpop.permute.xlu0 %723
        %725 = vrot.lane.b32.xlu0 %v187, 12
        %v726 = vpop.permute.xlu0 %725
        %727 = vrot.lane.b32.xlu0 %v188, 12
        %v728 = vpop.permute.xlu0 %727
        %729 = vrot.lane.b32.xlu0 %v190, 12
        %v730 = vpop.permute.xlu0 %729
        %731 = vrot.lane.b32.xlu0 %v191, 12
        %v732 = vpop.permute.xlu0 %731
        %vm765 = vcmask 130144
        %766 = vst.msk [vmem:[#allocation2] sm:$0xff] %vm765, %v670
        %767 = vst.msk [vmem:[#allocation2 + $0x8] sm:$0xff] %vm765, %v672
        %768 = vst.msk [vmem:[#allocation2 + $0x10] sm:$0xff] %vm765, %v674
        %769 = vst.msk [vmem:[#allocation2 + $0x18] sm:$0xff] %vm765, %v676
        %770 = vst.msk [vmem:[#allocation2 + $0x20] sm:$0xff] %vm765, %v678
        %771 = vst.msk [vmem:[#allocation2 + $0x28] sm:$0xff] %vm765, %v680
        %772 = vst.msk [vmem:[#allocation2 + $0x30] sm:$0xff] %vm765, %v682
        %773 = vst.msk [vmem:[#allocation2 + $0x38] sm:$0xff] %vm765, %v684
        %774 = vst.msk [vmem:[#allocation2 + $0x40] sm:$0xff] %vm765, %v686
        %775 = vst.msk [vmem:[#allocation2 + $0x48] sm:$0xff] %vm765, %v688
        %776 = vst.msk [vmem:[#allocation2 + $0x50] sm:$0xff] %vm765, %v690
        %777 = vst.msk [vmem:[#allocation2 + $0x58] sm:$0xff] %vm765, %v692
        %778 = vst.msk [vmem:[#allocation2 + $0x60] sm:$0xff] %vm765, %v694
        %779 = vst.msk [vmem:[#allocation2 + $0x68] sm:$0xff] %vm765, %v696
        %780 = vst.msk [vmem:[#allocation2 + $0x70] sm:$0xff] %vm765, %v698
        %781 = vst.msk [vmem:[#allocation2 + $0x78] sm:$0xff] %vm765, %v700
        %782 = vst.msk [vmem:[#allocation2 + $0x80] sm:$0xff] %vm765, %v702
        %783 = vst.msk [vmem:[#allocation2 + $0x88] sm:$0xff] %vm765, %v704
        %784 = vst.msk [vmem:[#allocation2 + $0x90] sm:$0xff] %vm765, %v706
        %785 = vst.msk [vmem:[#allocation2 + $0x98] sm:$0xff] %vm765, %v708
        %786 = vst.msk [vmem:[#allocation2 + $0xa0] sm:$0xff] %vm765, %v710
        %787 = vst.msk [vmem:[#allocation2 + $0xa8] sm:$0xff] %vm765, %v712
        %788 = vst.msk [vmem:[#allocation2 + $0xb0] sm:$0xff] %vm765, %v714
        %789 = vst.msk [vmem:[#allocation2 + $0xb8] sm:$0xff] %vm765, %v716
        %790 = vst.msk [vmem:[#allocation2 + $0xc0] sm:$0xff] %vm765, %v718
        %791 = vst.msk [vmem:[#allocation2 + $0xc8] sm:$0xff] %vm765, %v720
        %792 = vst.msk [vmem:[#allocation2 + $0xd0] sm:$0xff] %vm765, %v722
        %793 = vst.msk [vmem:[#allocation2 + $0xd8] sm:$0xff] %vm765, %v724
        %794 = vst.msk [vmem:[#allocation2 + $0xe0] sm:$0xff] %vm765, %v726
        %795 = vst.msk [vmem:[#allocation2 + $0xe8] sm:$0xff] %vm765, %v728
        %796 = vst.msk [vmem:[#allocation2 + $0xf0] sm:$0xff] %vm765, %v730
        %797 = vst.msk [vmem:[#allocation2 + $0xf8] sm:$0xff] %vm765, %v732
        %799 = vrot.lane.b32.xlu0 %v145, 16
        %v800 = vpop.permute.xlu0 %799
        %801 = vrot.lane.b32.xlu0 %v146, 16
        %v802 = vpop.permute.xlu0 %801
        %803 = vrot.lane.b32.xlu0 %v147, 16
        %v804 = vpop.permute.xlu0 %803
        %805 = vrot.lane.b32.xlu0 %v148, 16
        %v806 = vpop.permute.xlu0 %805
        %807 = vrot.lane.b32.xlu0 %v149, 16
        %v808 = vpop.permute.xlu0 %807
        %809 = vrot.lane.b32.xlu0 %v150, 16
        %v810 = vpop.permute.xlu0 %809
        %811 = vrot.lane.b32.xlu0 %v151, 16
        %v812 = vpop.permute.xlu0 %811
        %813 = vrot.lane.b32.xlu0 %v152, 16
        %v814 = vpop.permute.xlu0 %813
        %815 = vrot.lane.b32.xlu0 %v153, 16
        %v816 = vpop.permute.xlu0 %815
        %817 = vrot.lane.b32.xlu0 %v154, 16
        %v818 = vpop.permute.xlu0 %817
        %819 = vrot.lane.b32.xlu0 %v155, 16
        %v820 = vpop.permute.xlu0 %819
        %821 = vrot.lane.b32.xlu0 %v156, 16
        %v822 = vpop.permute.xlu0 %821
        %823 = vrot.lane.b32.xlu0 %v157, 16
        %v824 = vpop.permute.xlu0 %823
        %825 = vrot.lane.b32.xlu0 %v158, 16
        %v826 = vpop.permute.xlu0 %825
        %827 = vrot.lane.b32.xlu0 %v159, 16
        %v828 = vpop.permute.xlu0 %827
        %829 = vrot.lane.b32.xlu0 %v160, 16
        %v830 = vpop.permute.xlu0 %829
        %831 = vrot.lane.b32.xlu0 %v161, 16
        %v832 = vpop.permute.xlu0 %831
        %833 = vrot.lane.b32.xlu0 %v162, 16
        %v834 = vpop.permute.xlu0 %833
        %835 = vrot.lane.b32.xlu0 %v163, 16
        %v836 = vpop.permute.xlu0 %835
        %837 = vrot.lane.b32.xlu0 %v164, 16
        %v838 = vpop.permute.xlu0 %837
        %839 = vrot.lane.b32.xlu0 %v165, 16
        %v840 = vpop.permute.xlu0 %839
        %841 = vrot.lane.b32.xlu0 %v166, 16
        %v842 = vpop.permute.xlu0 %841
        %843 = vrot.lane.b32.xlu0 %v167, 16
        %v844 = vpop.permute.xlu0 %843
        %845 = vrot.lane.b32.xlu0 %v168, 16
        %v846 = vpop.permute.xlu0 %845
        %847 = vrot.lane.b32.xlu0 %v169, 16
        %v848 = vpop.permute.xlu0 %847
        %849 = vrot.lane.b32.xlu0 %v170, 16
        %v850 = vpop.permute.xlu0 %849
        %851 = vrot.lane.b32.xlu0 %v171, 16
        %v852 = vpop.permute.xlu0 %851
        %853 = vrot.lane.b32.xlu0 %v172, 16
        %v854 = vpop.permute.xlu0 %853
        %855 = vrot.lane.b32.xlu0 %v173, 16
        %v856 = vpop.permute.xlu0 %855
        %857 = vrot.lane.b32.xlu0 %v174, 16
        %v858 = vpop.permute.xlu0 %857
        %859 = vrot.lane.b32.xlu0 %v175, 16
        %v860 = vpop.permute.xlu0 %859
        %861 = vrot.lane.b32.xlu0 %v176, 16
        %v862 = vpop.permute.xlu0 %861
        %863 = vrot.lane.b32.xlu0 %v177, 16
        %v864 = vpop.permute.xlu0 %863
        %865 = vrot.lane.b32.xlu0 %v178, 16
        %v866 = vpop.permute.xlu0 %865
        %867 = vrot.lane.b32.xlu0 %v179, 16
        %v868 = vpop.permute.xlu0 %867
        %869 = vrot.lane.b32.xlu0 %v180, 16
        %v870 = vpop.permute.xlu0 %869
        %871 = vrot.lane.b32.xlu0 %v181, 16
        %v872 = vpop.permute.xlu0 %871
        %873 = vrot.lane.b32.xlu0 %v182, 16
        %v874 = vpop.permute.xlu0 %873
        %875 = vrot.lane.b32.xlu0 %v183, 16
        %v876 = vpop.permute.xlu0 %875
        %877 = vrot.lane.b32.xlu0 %v184, 16
        %v878 = vpop.permute.xlu0 %877
        %879 = vrot.lane.b32.xlu0 %v185, 16
        %v880 = vpop.permute.xlu0 %879
        %881 = vrot.lane.b32.xlu0 %v186, 16
        %v882 = vpop.permute.xlu0 %881
        %883 = vrot.lane.b32.xlu0 %v187, 16
        %v884 = vpop.permute.xlu0 %883
        %885 = vrot.lane.b32.xlu0 %v188, 16
        %v886 = vpop.permute.xlu0 %885
        %887 = vrot.lane.b32.xlu0 %v189, 16
        %v888 = vpop.permute.xlu0 %887
        %889 = vrot.lane.b32.xlu0 %v190, 16
        %v890 = vpop.permute.xlu0 %889
        %891 = vrot.lane.b32.xlu0 %v191, 16
        %v892 = vpop.permute.xlu0 %891
        %893 = vrot.lane.b32.xlu0 %v192, 16
        %v894 = vpop.permute.xlu0 %893
        %vm943 = vcmask 162945
        %944 = vst.msk [vmem:[#allocation2 - $0x1] sm:$0xfe] %vm943, %v800
        %vm945 = vcmask 162944
        %946 = vst.msk [vmem:[#allocation2 + $0x7] sm:$0xff] %vm945, %v802
        %vm947 = vcmask 155776
        %948 = vst.msk [vmem:[#allocation2 + $0xf] sm:$0x1] %vm947, %v804
        %949 = vst.msk [vmem:[#allocation2 + $0xf] sm:$0xfe] %vm943, %v806
        %950 = vst.msk [vmem:[#allocation2 + $0x17] sm:$0xff] %vm945, %v808
        %951 = vst.msk [vmem:[#allocation2 + $0x1f] sm:$0x1] %vm947, %v810
        %952 = vst.msk [vmem:[#allocation2 + $0x1f] sm:$0xfe] %vm943, %v812
        %953 = vst.msk [vmem:[#allocation2 + $0x27] sm:$0xff] %vm945, %v814
        %954 = vst.msk [vmem:[#allocation2 + $0x2f] sm:$0x1] %vm947, %v816
        %955 = vst.msk [vmem:[#allocation2 + $0x2f] sm:$0xfe] %vm943, %v818
        %956 = vst.msk [vmem:[#allocation2 + $0x37] sm:$0xff] %vm945, %v820
        %957 = vst.msk [vmem:[#allocation2 + $0x3f] sm:$0x1] %vm947, %v822
        %958 = vst.msk [vmem:[#allocation2 + $0x3f] sm:$0xfe] %vm943, %v824
        %959 = vst.msk [vmem:[#allocation2 + $0x47] sm:$0xff] %vm945, %v826
        %960 = vst.msk [vmem:[#allocation2 + $0x4f] sm:$0x1] %vm947, %v828
        %961 = vst.msk [vmem:[#allocation2 + $0x4f] sm:$0xfe] %vm943, %v830
        %962 = vst.msk [vmem:[#allocation2 + $0x57] sm:$0xff] %vm945, %v832
        %963 = vst.msk [vmem:[#allocation2 + $0x5f] sm:$0x1] %vm947, %v834
        %964 = vst.msk [vmem:[#allocation2 + $0x5f] sm:$0xfe] %vm943, %v836
        %965 = vst.msk [vmem:[#allocation2 + $0x67] sm:$0xff] %vm945, %v838
        %966 = vst.msk [vmem:[#allocation2 + $0x6f] sm:$0x1] %vm947, %v840
        %967 = vst.msk [vmem:[#allocation2 + $0x6f] sm:$0xfe] %vm943, %v842
        %968 = vst.msk [vmem:[#allocation2 + $0x77] sm:$0xff] %vm945, %v844
        %969 = vst.msk [vmem:[#allocation2 + $0x7f] sm:$0x1] %vm947, %v846
        %970 = vst.msk [vmem:[#allocation2 + $0x7f] sm:$0xfe] %vm943, %v848
        %971 = vst.msk [vmem:[#allocation2 + $0x87] sm:$0xff] %vm945, %v850
        %972 = vst.msk [vmem:[#allocation2 + $0x8f] sm:$0x1] %vm947, %v852
        %973 = vst.msk [vmem:[#allocation2 + $0x8f] sm:$0xfe] %vm943, %v854
        %974 = vst.msk [vmem:[#allocation2 + $0x97] sm:$0xff] %vm945, %v856
        %975 = vst.msk [vmem:[#allocation2 + $0x9f] sm:$0x1] %vm947, %v858
        %976 = vst.msk [vmem:[#allocation2 + $0x9f] sm:$0xfe] %vm943, %v860
        %977 = vst.msk [vmem:[#allocation2 + $0xa7] sm:$0xff] %vm945, %v862
        %978 = vst.msk [vmem:[#allocation2 + $0xaf] sm:$0x1] %vm947, %v864
        %979 = vst.msk [vmem:[#allocation2 + $0xaf] sm:$0xfe] %vm943, %v866
        %980 = vst.msk [vmem:[#allocation2 + $0xb7] sm:$0xff] %vm945, %v868
        %981 = vst.msk [vmem:[#allocation2 + $0xbf] sm:$0x1] %vm947, %v870
        %982 = vst.msk [vmem:[#allocation2 + $0xbf] sm:$0xfe] %vm943, %v872
        %983 = vst.msk [vmem:[#allocation2 + $0xc7] sm:$0xff] %vm945, %v874
        %984 = vst.msk [vmem:[#allocation2 + $0xcf] sm:$0x1] %vm947, %v876
        %985 = vst.msk [vmem:[#allocation2 + $0xcf] sm:$0xfe] %vm943, %v878
        %986 = vst.msk [vmem:[#allocation2 + $0xd7] sm:$0xff] %vm945, %v880
        %987 = vst.msk [vmem:[#allocation2 + $0xdf] sm:$0x1] %vm947, %v882
        %988 = vst.msk [vmem:[#allocation2 + $0xdf] sm:$0xfe] %vm943, %v884
        %989 = vst.msk [vmem:[#allocation2 + $0xe7] sm:$0xff] %vm945, %v886
        %990 = vst.msk [vmem:[#allocation2 + $0xef] sm:$0x1] %vm947, %v888
        %991 = vst.msk [vmem:[#allocation2 + $0xef] sm:$0xfe] %vm943, %v890
        %992 = vst.msk [vmem:[#allocation2 + $0xf7] sm:$0xff] %vm945, %v892
        %993 = vst.msk [vmem:[#allocation2 + $0xff] sm:$0x1] %vm947, %v894
        %994 = vrot.lane.b32.xlu0 %v145, 20
        %v995 = vpop.permute.xlu0 %994
        %996 = vrot.lane.b32.xlu0 %v146, 20
        %v997 = vpop.permute.xlu0 %996
        %998 = vrot.lane.b32.xlu0 %v147, 20
        %v999 = vpop.permute.xlu0 %998
        %1000 = vrot.lane.b32.xlu0 %v148, 20
        %v1001 = vpop.permute.xlu0 %1000
        %1002 = vrot.lane.b32.xlu0 %v149, 20
        %v1003 = vpop.permute.xlu0 %1002
        %1004 = vrot.lane.b32.xlu0 %v150, 20
        %v1005 = vpop.permute.xlu0 %1004
        %1006 = vrot.lane.b32.xlu0 %v151, 20
        %v1007 = vpop.permute.xlu0 %1006
        %1008 = vrot.lane.b32.xlu0 %v152, 20
        %v1009 = vpop.permute.xlu0 %1008
        %1010 = vrot.lane.b32.xlu0 %v153, 20
        %v1011 = vpop.permute.xlu0 %1010
        %1012 = vrot.lane.b32.xlu0 %v154, 20
        %v1013 = vpop.permute.xlu0 %1012
        %1014 = vrot.lane.b32.xlu0 %v155, 20
        %v1015 = vpop.permute.xlu0 %1014
        %1016 = vrot.lane.b32.xlu0 %v156, 20
        %v1017 = vpop.permute.xlu0 %1016
        %1018 = vrot.lane.b32.xlu0 %v157, 20
        %v1019 = vpop.permute.xlu0 %1018
        %1020 = vrot.lane.b32.xlu0 %v158, 20
        %v1021 = vpop.permute.xlu0 %1020
        %1022 = vrot.lane.b32.xlu0 %v159, 20
        %v1023 = vpop.permute.xlu0 %1022
        %1024 = vrot.lane.b32.xlu0 %v160, 20
        %v1025 = vpop.permute.xlu0 %1024
        %1026 = vrot.lane.b32.xlu0 %v161, 20
        %v1027 = vpop.permute.xlu0 %1026
        %1028 = vrot.lane.b32.xlu0 %v162, 20
        %v1029 = vpop.permute.xlu0 %1028
        %1030 = vrot.lane.b32.xlu0 %v163, 20
        %v1031 = vpop.permute.xlu0 %1030
        %1032 = vrot.lane.b32.xlu0 %v164, 20
        %v1033 = vpop.permute.xlu0 %1032
        %1034 = vrot.lane.b32.xlu0 %v165, 20
        %v1035 = vpop.permute.xlu0 %1034
        %1036 = vrot.lane.b32.xlu0 %v166, 20
        %v1037 = vpop.permute.xlu0 %1036
        %1038 = vrot.lane.b32.xlu0 %v167, 20
        %v1039 = vpop.permute.xlu0 %1038
        %1040 = vrot.lane.b32.xlu0 %v168, 20
        %v1041 = vpop.permute.xlu0 %1040
        %1042 = vrot.lane.b32.xlu0 %v169, 20
        %v1043 = vpop.permute.xlu0 %1042
        %1044 = vrot.lane.b32.xlu0 %v170, 20
        %v1045 = vpop.permute.xlu0 %1044
        %1046 = vrot.lane.b32.xlu0 %v171, 20
        %v1047 = vpop.permute.xlu0 %1046
        %1048 = vrot.lane.b32.xlu0 %v172, 20
        %v1049 = vpop.permute.xlu0 %1048
        %1050 = vrot.lane.b32.xlu0 %v173, 20
        %v1051 = vpop.permute.xlu0 %1050
        %1052 = vrot.lane.b32.xlu0 %v174, 20
        %v1053 = vpop.permute.xlu0 %1052
        %1054 = vrot.lane.b32.xlu0 %v175, 20
        %v1055 = vpop.permute.xlu0 %1054
        %1056 = vrot.lane.b32.xlu0 %v176, 20
        %v1057 = vpop.permute.xlu0 %1056
        %1058 = vrot.lane.b32.xlu0 %v177, 20
        %v1059 = vpop.permute.xlu0 %1058
        %1060 = vrot.lane.b32.xlu0 %v178, 20
        %v1061 = vpop.permute.xlu0 %1060
        %1062 = vrot.lane.b32.xlu0 %v179, 20
        %v1063 = vpop.permute.xlu0 %1062
        %1064 = vrot.lane.b32.xlu0 %v180, 20
        %v1065 = vpop.permute.xlu0 %1064
        %1066 = vrot.lane.b32.xlu0 %v181, 20
        %v1067 = vpop.permute.xlu0 %1066
        %1068 = vrot.lane.b32.xlu0 %v182, 20
        %v1069 = vpop.permute.xlu0 %1068
        %1070 = vrot.lane.b32.xlu0 %v183, 20
        %v1071 = vpop.permute.xlu0 %1070
        %1072 = vrot.lane.b32.xlu0 %v184, 20
        %v1073 = vpop.permute.xlu0 %1072
        %1074 = vrot.lane.b32.xlu0 %v185, 20
        %v1075 = vpop.permute.xlu0 %1074
        %1076 = vrot.lane.b32.xlu0 %v186, 20
        %v1077 = vpop.permute.xlu0 %1076
        %1078 = vrot.lane.b32.xlu0 %v187, 20
        %v1079 = vpop.permute.xlu0 %1078
        %1080 = vrot.lane.b32.xlu0 %v188, 20
        %v1081 = vpop.permute.xlu0 %1080
        %1082 = vrot.lane.b32.xlu0 %v189, 20
        %v1083 = vpop.permute.xlu0 %1082
        %1084 = vrot.lane.b32.xlu0 %v190, 20
        %v1085 = vpop.permute.xlu0 %1084
        %1086 = vrot.lane.b32.xlu0 %v191, 20
        %v1087 = vpop.permute.xlu0 %1086
        %1088 = vrot.lane.b32.xlu0 %v192, 20
        %v1089 = vpop.permute.xlu0 %1088
        %vm1138 = vcmask 195746
        %1139 = vst.msk [vmem:[#allocation2 - $0x2] sm:$0xfc] %vm1138, %v995
        %vm1140 = vcmask 195744
        %1141 = vst.msk [vmem:[#allocation2 + $0x6] sm:$0xff] %vm1140, %v997
        %vm1142 = vcmask 189600
        %1143 = vst.msk [vmem:[#allocation2 + $0xe] sm:$0x3] %vm1142, %v999
        %1144 = vst.msk [vmem:[#allocation2 + $0xe] sm:$0xfc] %vm1138, %v1001
        %1145 = vst.msk [vmem:[#allocation2 + $0x16] sm:$0xff] %vm1140, %v1003
        %1146 = vst.msk [vmem:[#allocation2 + $0x1e] sm:$0x3] %vm1142, %v1005
        %1147 = vst.msk [vmem:[#allocation2 + $0x1e] sm:$0xfc] %vm1138, %v1007
        %1148 = vst.msk [vmem:[#allocation2 + $0x26] sm:$0xff] %vm1140, %v1009
        %1149 = vst.msk [vmem:[#allocation2 + $0x2e] sm:$0x3] %vm1142, %v1011
        %1150 = vst.msk [vmem:[#allocation2 + $0x2e] sm:$0xfc] %vm1138, %v1013
        %1151 = vst.msk [vmem:[#allocation2 + $0x36] sm:$0xff] %vm1140, %v1015
        %1152 = vst.msk [vmem:[#allocation2 + $0x3e] sm:$0x3] %vm1142, %v1017
        %1153 = vst.msk [vmem:[#allocation2 + $0x3e] sm:$0xfc] %vm1138, %v1019
        %1154 = vst.msk [vmem:[#allocation2 + $0x46] sm:$0xff] %vm1140, %v1021
        %1155 = vst.msk [vmem:[#allocation2 + $0x4e] sm:$0x3] %vm1142, %v1023
        %1156 = vst.msk [vmem:[#allocation2 + $0x4e] sm:$0xfc] %vm1138, %v1025
        %1157 = vst.msk [vmem:[#allocation2 + $0x56] sm:$0xff] %vm1140, %v1027
        %1158 = vst.msk [vmem:[#allocation2 + $0x5e] sm:$0x3] %vm1142, %v1029
        %1159 = vst.msk [vmem:[#allocation2 + $0x5e] sm:$0xfc] %vm1138, %v1031
        %1160 = vst.msk [vmem:[#allocation2 + $0x66] sm:$0xff] %vm1140, %v1033
        %1161 = vst.msk [vmem:[#allocation2 + $0x6e] sm:$0x3] %vm1142, %v1035
        %1162 = vst.msk [vmem:[#allocation2 + $0x6e] sm:$0xfc] %vm1138, %v1037
        %1163 = vst.msk [vmem:[#allocation2 + $0x76] sm:$0xff] %vm1140, %v1039
        %1164 = vst.msk [vmem:[#allocation2 + $0x7e] sm:$0x3] %vm1142, %v1041
        %1165 = vst.msk [vmem:[#allocation2 + $0x7e] sm:$0xfc] %vm1138, %v1043
        %1166 = vst.msk [vmem:[#allocation2 + $0x86] sm:$0xff] %vm1140, %v1045
        %1167 = vst.msk [vmem:[#allocation2 + $0x8e] sm:$0x3] %vm1142, %v1047
        %1168 = vst.msk [vmem:[#allocation2 + $0x8e] sm:$0xfc] %vm1138, %v1049
        %1169 = vst.msk [vmem:[#allocation2 + $0x96] sm:$0xff] %vm1140, %v1051
        %1170 = vst.msk [vmem:[#allocation2 + $0x9e] sm:$0x3] %vm1142, %v1053
        %1171 = vst.msk [vmem:[#allocation2 + $0x9e] sm:$0xfc] %vm1138, %v1055
        %1172 = vst.msk [vmem:[#allocation2 + $0xa6] sm:$0xff] %vm1140, %v1057
        %1173 = vst.msk [vmem:[#allocation2 + $0xae] sm:$0x3] %vm1142, %v1059
        %1174 = vst.msk [vmem:[#allocation2 + $0xae] sm:$0xfc] %vm1138, %v1061
        %1175 = vst.msk [vmem:[#allocation2 + $0xb6] sm:$0xff] %vm1140, %v1063
        %1176 = vst.msk [vmem:[#allocation2 + $0xbe] sm:$0x3] %vm1142, %v1065
        %1177 = vst.msk [vmem:[#allocation2 + $0xbe] sm:$0xfc] %vm1138, %v1067
        %1178 = vst.msk [vmem:[#allocation2 + $0xc6] sm:$0xff] %vm1140, %v1069
        %1179 = vst.msk [vmem:[#allocation2 + $0xce] sm:$0x3] %vm1142, %v1071
        %1180 = vst.msk [vmem:[#allocation2 + $0xce] sm:$0xfc] %vm1138, %v1073
        %1181 = vst.msk [vmem:[#allocation2 + $0xd6] sm:$0xff] %vm1140, %v1075
        %1182 = vst.msk [vmem:[#allocation2 + $0xde] sm:$0x3] %vm1142, %v1077
        %1183 = vst.msk [vmem:[#allocation2 + $0xde] sm:$0xfc] %vm1138, %v1079
        %1184 = vst.msk [vmem:[#allocation2 + $0xe6] sm:$0xff] %vm1140, %v1081
        %1185 = vst.msk [vmem:[#allocation2 + $0xee] sm:$0x3] %vm1142, %v1083
        %1186 = vst.msk [vmem:[#allocation2 + $0xee] sm:$0xfc] %vm1138, %v1085
        %1187 = vst.msk [vmem:[#allocation2 + $0xf6] sm:$0xff] %vm1140, %v1087
        %1188 = vst.msk [vmem:[#allocation2 + $0xfe] sm:$0x3] %vm1142, %v1089
        %1191 = vrot.lane.b32.xlu0 %v148, 24
        %v1192 = vpop.permute.xlu0 %1191
        %1193 = vrot.lane.b32.xlu0 %v149, 24
        %v1194 = vpop.permute.xlu0 %1193
        %1195 = vrot.lane.b32.xlu0 %v151, 24
        %v1196 = vpop.permute.xlu0 %1195
        %1197 = vrot.lane.b32.xlu0 %v152, 24
        %v1198 = vpop.permute.xlu0 %1197
        %1199 = vrot.lane.b32.xlu0 %v154, 24
        %v1200 = vpop.permute.xlu0 %1199
        %1201 = vrot.lane.b32.xlu0 %v155, 24
        %v1202 = vpop.permute.xlu0 %1201
        %1203 = vrot.lane.b32.xlu0 %v157, 24
        %v1204 = vpop.permute.xlu0 %1203
        %1205 = vrot.lane.b32.xlu0 %v158, 24
        %v1206 = vpop.permute.xlu0 %1205
        %1207 = vrot.lane.b32.xlu0 %v160, 24
        %v1208 = vpop.permute.xlu0 %1207
        %1209 = vrot.lane.b32.xlu0 %v161, 24
        %v1210 = vpop.permute.xlu0 %1209
        %1211 = vrot.lane.b32.xlu0 %v163, 24
        %v1212 = vpop.permute.xlu0 %1211
        %1213 = vrot.lane.b32.xlu0 %v164, 24
        %v1214 = vpop.permute.xlu0 %1213
        %1215 = vrot.lane.b32.xlu0 %v166, 24
        %v1216 = vpop.permute.xlu0 %1215
        %1217 = vrot.lane.b32.xlu0 %v167, 24
        %v1218 = vpop.permute.xlu0 %1217
        %1219 = vrot.lane.b32.xlu0 %v169, 24
        %v1220 = vpop.permute.xlu0 %1219
        %1221 = vrot.lane.b32.xlu0 %v170, 24
        %v1222 = vpop.permute.xlu0 %1221
        %1223 = vrot.lane.b32.xlu0 %v172, 24
        %v1224 = vpop.permute.xlu0 %1223
        %1225 = vrot.lane.b32.xlu0 %v173, 24
        %v1226 = vpop.permute.xlu0 %1225
        %1227 = vrot.lane.b32.xlu0 %v175, 24
        %v1228 = vpop.permute.xlu0 %1227
        %1229 = vrot.lane.b32.xlu0 %v176, 24
        %v1230 = vpop.permute.xlu0 %1229
        %1231 = vrot.lane.b32.xlu0 %v178, 24
        %v1232 = vpop.permute.xlu0 %1231
        %1233 = vrot.lane.b32.xlu0 %v179, 24
        %v1234 = vpop.permute.xlu0 %1233
        %1235 = vrot.lane.b32.xlu0 %v181, 24
        %v1236 = vpop.permute.xlu0 %1235
        %1237 = vrot.lane.b32.xlu0 %v182, 24
        %v1238 = vpop.permute.xlu0 %1237
        %1239 = vrot.lane.b32.xlu0 %v184, 24
        %v1240 = vpop.permute.xlu0 %1239
        %1241 = vrot.lane.b32.xlu0 %v185, 24
        %v1242 = vpop.permute.xlu0 %1241
        %1243 = vrot.lane.b32.xlu0 %v187, 24
        %v1244 = vpop.permute.xlu0 %1243
        %1245 = vrot.lane.b32.xlu0 %v188, 24
        %v1246 = vpop.permute.xlu0 %1245
        %1247 = vrot.lane.b32.xlu0 %v190, 24
        %v1248 = vpop.permute.xlu0 %1247
        %1249 = vrot.lane.b32.xlu0 %v191, 24
        %v1250 = vpop.permute.xlu0 %1249
        %1251 = vrot.lane.b32.xlu0 %v193, 24
        %v1252 = vpop.permute.xlu0 %1251
        %1253 = vrot.lane.b32.xlu0 %v194, 24
        %v1254 = vpop.permute.xlu0 %1253
        %vm1287 = vcmask 228544
        %1288 = vst.msk [vmem:[#allocation2] sm:$0xff] %vm1287, %v1192
        %1289 = vst.msk [vmem:[#allocation2 + $0x8] sm:$0xff] %vm1287, %v1194
        %1290 = vst.msk [vmem:[#allocation2 + $0x10] sm:$0xff] %vm1287, %v1196
        %1291 = vst.msk [vmem:[#allocation2 + $0x18] sm:$0xff] %vm1287, %v1198
        %1292 = vst.msk [vmem:[#allocation2 + $0x20] sm:$0xff] %vm1287, %v1200
        %1293 = vst.msk [vmem:[#allocation2 + $0x28] sm:$0xff] %vm1287, %v1202
        %1294 = vst.msk [vmem:[#allocation2 + $0x30] sm:$0xff] %vm1287, %v1204
        %1295 = vst.msk [vmem:[#allocation2 + $0x38] sm:$0xff] %vm1287, %v1206
        %1296 = vst.msk [vmem:[#allocation2 + $0x40] sm:$0xff] %vm1287, %v1208
        %1297 = vst.msk [vmem:[#allocation2 + $0x48] sm:$0xff] %vm1287, %v1210
        %1298 = vst.msk [vmem:[#allocation2 + $0x50] sm:$0xff] %vm1287, %v1212
        %1299 = vst.msk [vmem:[#allocation2 + $0x58] sm:$0xff] %vm1287, %v1214
        %1300 = vst.msk [vmem:[#allocation2 + $0x60] sm:$0xff] %vm1287, %v1216
        %1301 = vst.msk [vmem:[#allocation2 + $0x68] sm:$0xff] %vm1287, %v1218
        %1302 = vst.msk [vmem:[#allocation2 + $0x70] sm:$0xff] %vm1287, %v1220
        %1303 = vst.msk [vmem:[#allocation2 + $0x78] sm:$0xff] %vm1287, %v1222
        %1304 = vst.msk [vmem:[#allocation2 + $0x80] sm:$0xff] %vm1287, %v1224
        %1305 = vst.msk [vmem:[#allocation2 + $0x88] sm:$0xff] %vm1287, %v1226
        %1306 = vst.msk [vmem:[#allocation2 + $0x90] sm:$0xff] %vm1287, %v1228
        %1307 = vst.msk [vmem:[#allocation2 + $0x98] sm:$0xff] %vm1287, %v1230
        %1308 = vst.msk [vmem:[#allocation2 + $0xa0] sm:$0xff] %vm1287, %v1232
        %1309 = vst.msk [vmem:[#allocation2 + $0xa8] sm:$0xff] %vm1287, %v1234
        %1310 = vst.msk [vmem:[#allocation2 + $0xb0] sm:$0xff] %vm1287, %v1236
        %1311 = vst.msk [vmem:[#allocation2 + $0xb8] sm:$0xff] %vm1287, %v1238
        %1312 = vst.msk [vmem:[#allocation2 + $0xc0] sm:$0xff] %vm1287, %v1240
        %1313 = vst.msk [vmem:[#allocation2 + $0xc8] sm:$0xff] %vm1287, %v1242
        %1314 = vst.msk [vmem:[#allocation2 + $0xd0] sm:$0xff] %vm1287, %v1244
        %1315 = vst.msk [vmem:[#allocation2 + $0xd8] sm:$0xff] %vm1287, %v1246
        %1316 = vst.msk [vmem:[#allocation2 + $0xe0] sm:$0xff] %vm1287, %v1248
        %1317 = vst.msk [vmem:[#allocation2 + $0xe8] sm:$0xff] %vm1287, %v1250
        %1318 = vst.msk [vmem:[#allocation2 + $0xf0] sm:$0xff] %vm1287, %v1252
        %1319 = vst.msk [vmem:[#allocation2 + $0xf8] sm:$0xff] %vm1287, %v1254
        %1321 = vrot.lane.b32.xlu0 %v148, 28
        %v1322 = vpop.permute.xlu0 %1321
        %1323 = vrot.lane.b32.xlu0 %v149, 28
        %v1324 = vpop.permute.xlu0 %1323
        %1325 = vrot.lane.b32.xlu0 %v150, 28
        %v1326 = vpop.permute.xlu0 %1325
        %1327 = vrot.lane.b32.xlu0 %v151, 28
        %v1328 = vpop.permute.xlu0 %1327
        %1329 = vrot.lane.b32.xlu0 %v152, 28
        %v1330 = vpop.permute.xlu0 %1329
        %1331 = vrot.lane.b32.xlu0 %v153, 28
        %v1332 = vpop.permute.xlu0 %1331
        %1333 = vrot.lane.b32.xlu0 %v154, 28
        %v1334 = vpop.permute.xlu0 %1333
        %1335 = vrot.lane.b32.xlu0 %v155, 28
        %v1336 = vpop.permute.xlu0 %1335
        %1337 = vrot.lane.b32.xlu0 %v156, 28
        %v1338 = vpop.permute.xlu0 %1337
        %1339 = vrot.lane.b32.xlu0 %v157, 28
        %v1340 = vpop.permute.xlu0 %1339
        %1341 = vrot.lane.b32.xlu0 %v158, 28
        %v1342 = vpop.permute.xlu0 %1341
        %1343 = vrot.lane.b32.xlu0 %v159, 28
        %v1344 = vpop.permute.xlu0 %1343
        %1345 = vrot.lane.b32.xlu0 %v160, 28
        %v1346 = vpop.permute.xlu0 %1345
        %1347 = vrot.lane.b32.xlu0 %v161, 28
        %v1348 = vpop.permute.xlu0 %1347
        %1349 = vrot.lane.b32.xlu0 %v162, 28
        %v1350 = vpop.permute.xlu0 %1349
        %1351 = vrot.lane.b32.xlu0 %v163, 28
        %v1352 = vpop.permute.xlu0 %1351
        %1353 = vrot.lane.b32.xlu0 %v164, 28
        %v1354 = vpop.permute.xlu0 %1353
        %1355 = vrot.lane.b32.xlu0 %v165, 28
        %v1356 = vpop.permute.xlu0 %1355
        %1357 = vrot.lane.b32.xlu0 %v166, 28
        %v1358 = vpop.permute.xlu0 %1357
        %1359 = vrot.lane.b32.xlu0 %v167, 28
        %v1360 = vpop.permute.xlu0 %1359
        %1361 = vrot.lane.b32.xlu0 %v168, 28
        %v1362 = vpop.permute.xlu0 %1361
        %1363 = vrot.lane.b32.xlu0 %v169, 28
        %v1364 = vpop.permute.xlu0 %1363
        %1365 = vrot.lane.b32.xlu0 %v170, 28
        %v1366 = vpop.permute.xlu0 %1365
        %1367 = vrot.lane.b32.xlu0 %v171, 28
        %v1368 = vpop.permute.xlu0 %1367
        %1369 = vrot.lane.b32.xlu0 %v172, 28
        %v1370 = vpop.permute.xlu0 %1369
        %1371 = vrot.lane.b32.xlu0 %v173, 28
        %v1372 = vpop.permute.xlu0 %1371
        %1373 = vrot.lane.b32.xlu0 %v174, 28
        %v1374 = vpop.permute.xlu0 %1373
        %1375 = vrot.lane.b32.xlu0 %v175, 28
        %v1376 = vpop.permute.xlu0 %1375
        %1377 = vrot.lane.b32.xlu0 %v176, 28
        %v1378 = vpop.permute.xlu0 %1377
        %1379 = vrot.lane.b32.xlu0 %v177, 28
        %v1380 = vpop.permute.xlu0 %1379
        %1381 = vrot.lane.b32.xlu0 %v178, 28
        %v1382 = vpop.permute.xlu0 %1381
        %1383 = vrot.lane.b32.xlu0 %v179, 28
        %v1384 = vpop.permute.xlu0 %1383
        %1385 = vrot.lane.b32.xlu0 %v180, 28
        %v1386 = vpop.permute.xlu0 %1385
        %1387 = vrot.lane.b32.xlu0 %v181, 28
        %v1388 = vpop.permute.xlu0 %1387
        %1389 = vrot.lane.b32.xlu0 %v182, 28
        %v1390 = vpop.permute.xlu0 %1389
        %1391 = vrot.lane.b32.xlu0 %v183, 28
        %v1392 = vpop.permute.xlu0 %1391
        %1393 = vrot.lane.b32.xlu0 %v184, 28
        %v1394 = vpop.permute.xlu0 %1393
        %1395 = vrot.lane.b32.xlu0 %v185, 28
        %v1396 = vpop.permute.xlu0 %1395
        %1397 = vrot.lane.b32.xlu0 %v186, 28
        %v1398 = vpop.permute.xlu0 %1397
        %1399 = vrot.lane.b32.xlu0 %v187, 28
        %v1400 = vpop.permute.xlu0 %1399
        %1401 = vrot.lane.b32.xlu0 %v188, 28
        %v1402 = vpop.permute.xlu0 %1401
        %1403 = vrot.lane.b32.xlu0 %v189, 28
        %v1404 = vpop.permute.xlu0 %1403
        %1405 = vrot.lane.b32.xlu0 %v190, 28
        %v1406 = vpop.permute.xlu0 %1405
        %1407 = vrot.lane.b32.xlu0 %v191, 28
        %v1408 = vpop.permute.xlu0 %1407
        %1409 = vrot.lane.b32.xlu0 %v192, 28
        %v1410 = vpop.permute.xlu0 %1409
        %1411 = vrot.lane.b32.xlu0 %v193, 28
        %v1412 = vpop.permute.xlu0 %1411
        %1413 = vrot.lane.b32.xlu0 %v194, 28
        %v1414 = vpop.permute.xlu0 %1413
        %1415 = vrot.lane.b32.xlu0 %v195, 28
        %v1416 = vpop.permute.xlu0 %1415
        %vm1465 = vcmask 261345
        %1466 = vst.msk [vmem:[#allocation2 - $0x1] sm:$0xfe] %vm1465, %v1322
        %vm1467 = vcmask 261344
        %1468 = vst.msk [vmem:[#allocation2 + $0x7] sm:$0xff] %vm1467, %v1324
        %vm1469 = vcmask 254176
        %1470 = vst.msk [vmem:[#allocation2 + $0xf] sm:$0x1] %vm1469, %v1326
        %1471 = vst.msk [vmem:[#allocation2 + $0xf] sm:$0xfe] %vm1465, %v1328
        %1472 = vst.msk [vmem:[#allocation2 + $0x17] sm:$0xff] %vm1467, %v1330
        %1473 = vst.msk [vmem:[#allocation2 + $0x1f] sm:$0x1] %vm1469, %v1332
        %1474 = vst.msk [vmem:[#allocation2 + $0x1f] sm:$0xfe] %vm1465, %v1334
        %1475 = vst.msk [vmem:[#allocation2 + $0x27] sm:$0xff] %vm1467, %v1336
        %1476 = vst.msk [vmem:[#allocation2 + $0x2f] sm:$0x1] %vm1469, %v1338
        %1477 = vst.msk [vmem:[#allocation2 + $0x2f] sm:$0xfe] %vm1465, %v1340
        %1478 = vst.msk [vmem:[#allocation2 + $0x37] sm:$0xff] %vm1467, %v1342
        %1479 = vst.msk [vmem:[#allocation2 + $0x3f] sm:$0x1] %vm1469, %v1344
        %1480 = vst.msk [vmem:[#allocation2 + $0x3f] sm:$0xfe] %vm1465, %v1346
        %1481 = vst.msk [vmem:[#allocation2 + $0x47] sm:$0xff] %vm1467, %v1348
        %1482 = vst.msk [vmem:[#allocation2 + $0x4f] sm:$0x1] %vm1469, %v1350
        %1483 = vst.msk [vmem:[#allocation2 + $0x4f] sm:$0xfe] %vm1465, %v1352
        %1484 = vst.msk [vmem:[#allocation2 + $0x57] sm:$0xff] %vm1467, %v1354
        %1485 = vst.msk [vmem:[#allocation2 + $0x5f] sm:$0x1] %vm1469, %v1356
        %1486 = vst.msk [vmem:[#allocation2 + $0x5f] sm:$0xfe] %vm1465, %v1358
        %1487 = vst.msk [vmem:[#allocation2 + $0x67] sm:$0xff] %vm1467, %v1360
        %1488 = vst.msk [vmem:[#allocation2 + $0x6f] sm:$0x1] %vm1469, %v1362
        %1489 = vst.msk [vmem:[#allocation2 + $0x6f] sm:$0xfe] %vm1465, %v1364
        %1490 = vst.msk [vmem:[#allocation2 + $0x77] sm:$0xff] %vm1467, %v1366
        %1491 = vst.msk [vmem:[#allocation2 + $0x7f] sm:$0x1] %vm1469, %v1368
        %1492 = vst.msk [vmem:[#allocation2 + $0x7f] sm:$0xfe] %vm1465, %v1370
        %1493 = vst.msk [vmem:[#allocation2 + $0x87] sm:$0xff] %vm1467, %v1372
        %1494 = vst.msk [vmem:[#allocation2 + $0x8f] sm:$0x1] %vm1469, %v1374
        %1495 = vst.msk [vmem:[#allocation2 + $0x8f] sm:$0xfe] %vm1465, %v1376
        %1496 = vst.msk [vmem:[#allocation2 + $0x97] sm:$0xff] %vm1467, %v1378
        %1497 = vst.msk [vmem:[#allocation2 + $0x9f] sm:$0x1] %vm1469, %v1380
        %1498 = vst.msk [vmem:[#allocation2 + $0x9f] sm:$0xfe] %vm1465, %v1382
        %1499 = vst.msk [vmem:[#allocation2 + $0xa7] sm:$0xff] %vm1467, %v1384
        %1500 = vst.msk [vmem:[#allocation2 + $0xaf] sm:$0x1] %vm1469, %v1386
        %1501 = vst.msk [vmem:[#allocation2 + $0xaf] sm:$0xfe] %vm1465, %v1388
        %1502 = vst.msk [vmem:[#allocation2 + $0xb7] sm:$0xff] %vm1467, %v1390
        %1503 = vst.msk [vmem:[#allocation2 + $0xbf] sm:$0x1] %vm1469, %v1392
        %1504 = vst.msk [vmem:[#allocation2 + $0xbf] sm:$0xfe] %vm1465, %v1394
        %1505 = vst.msk [vmem:[#allocation2 + $0xc7] sm:$0xff] %vm1467, %v1396
        %1506 = vst.msk [vmem:[#allocation2 + $0xcf] sm:$0x1] %vm1469, %v1398
        %1507 = vst.msk [vmem:[#allocation2 + $0xcf] sm:$0xfe] %vm1465, %v1400
        %1508 = vst.msk [vmem:[#allocation2 + $0xd7] sm:$0xff] %vm1467, %v1402
        %1509 = vst.msk [vmem:[#allocation2 + $0xdf] sm:$0x1] %vm1469, %v1404
        %1510 = vst.msk [vmem:[#allocation2 + $0xdf] sm:$0xfe] %vm1465, %v1406
        %1511 = vst.msk [vmem:[#allocation2 + $0xe7] sm:$0xff] %vm1467, %v1408
        %1512 = vst.msk [vmem:[#allocation2 + $0xef] sm:$0x1] %vm1469, %v1410
        %1513 = vst.msk [vmem:[#allocation2 + $0xef] sm:$0xfe] %vm1465, %v1412
        %1514 = vst.msk [vmem:[#allocation2 + $0xf7] sm:$0xff] %vm1467, %v1414
        %1515 = vst.msk [vmem:[#allocation2 + $0xff] sm:$0x1] %vm1469, %v1416
        %1516 = vrot.lane.b32.xlu0 %v148, 32
        %v1517 = vpop.permute.xlu0 %1516
        %1518 = vrot.lane.b32.xlu0 %v149, 32
        %v1519 = vpop.permute.xlu0 %1518
        %1520 = vrot.lane.b32.xlu0 %v150, 32
        %v1521 = vpop.permute.xlu0 %1520
        %1522 = vrot.lane.b32.xlu0 %v151, 32
        %v1523 = vpop.permute.xlu0 %1522
        %1524 = vrot.lane.b32.xlu0 %v152, 32
        %v1525 = vpop.permute.xlu0 %1524
        %1526 = vrot.lane.b32.xlu0 %v153, 32
        %v1527 = vpop.permute.xlu0 %1526
        %1528 = vrot.lane.b32.xlu0 %v154, 32
        %v1529 = vpop.permute.xlu0 %1528
        %1530 = vrot.lane.b32.xlu0 %v155, 32
        %v1531 = vpop.permute.xlu0 %1530
        %1532 = vrot.lane.b32.xlu0 %v156, 32
        %v1533 = vpop.permute.xlu0 %1532
        %1534 = vrot.lane.b32.xlu0 %v157, 32
        %v1535 = vpop.permute.xlu0 %1534
        %1536 = vrot.lane.b32.xlu0 %v158, 32
        %v1537 = vpop.permute.xlu0 %1536
        %1538 = vrot.lane.b32.xlu0 %v159, 32
        %v1539 = vpop.permute.xlu0 %1538
        %1540 = vrot.lane.b32.xlu0 %v160, 32
        %v1541 = vpop.permute.xlu0 %1540
        %1542 = vrot.lane.b32.xlu0 %v161, 32
        %v1543 = vpop.permute.xlu0 %1542
        %1544 = vrot.lane.b32.xlu0 %v162, 32
        %v1545 = vpop.permute.xlu0 %1544
        %1546 = vrot.lane.b32.xlu0 %v163, 32
        %v1547 = vpop.permute.xlu0 %1546
        %1548 = vrot.lane.b32.xlu0 %v164, 32
        %v1549 = vpop.permute.xlu0 %1548
        %1550 = vrot.lane.b32.xlu0 %v165, 32
        %v1551 = vpop.permute.xlu0 %1550
        %1552 = vrot.lane.b32.xlu0 %v166, 32
        %v1553 = vpop.permute.xlu0 %1552
        %1554 = vrot.lane.b32.xlu0 %v167, 32
        %v1555 = vpop.permute.xlu0 %1554
        %1556 = vrot.lane.b32.xlu0 %v168, 32
        %v1557 = vpop.permute.xlu0 %1556
        %1558 = vrot.lane.b32.xlu0 %v169, 32
        %v1559 = vpop.permute.xlu0 %1558
        %1560 = vrot.lane.b32.xlu0 %v170, 32
        %v1561 = vpop.permute.xlu0 %1560
        %1562 = vrot.lane.b32.xlu0 %v171, 32
        %v1563 = vpop.permute.xlu0 %1562
        %1564 = vrot.lane.b32.xlu0 %v172, 32
        %v1565 = vpop.permute.xlu0 %1564
        %1566 = vrot.lane.b32.xlu0 %v173, 32
        %v1567 = vpop.permute.xlu0 %1566
        %1568 = vrot.lane.b32.xlu0 %v174, 32
        %v1569 = vpop.permute.xlu0 %1568
        %1570 = vrot.lane.b32.xlu0 %v175, 32
        %v1571 = vpop.permute.xlu0 %1570
        %1572 = vrot.lane.b32.xlu0 %v176, 32
        %v1573 = vpop.permute.xlu0 %1572
        %1574 = vrot.lane.b32.xlu0 %v177, 32
        %v1575 = vpop.permute.xlu0 %1574
        %1576 = vrot.lane.b32.xlu0 %v178, 32
        %v1577 = vpop.permute.xlu0 %1576
        %1578 = vrot.lane.b32.xlu0 %v179, 32
        %v1579 = vpop.permute.xlu0 %1578
        %1580 = vrot.lane.b32.xlu0 %v180, 32
        %v1581 = vpop.permute.xlu0 %1580
        %1582 = vrot.lane.b32.xlu0 %v181, 32
        %v1583 = vpop.permute.xlu0 %1582
        %1584 = vrot.lane.b32.xlu0 %v182, 32
        %v1585 = vpop.permute.xlu0 %1584
        %1586 = vrot.lane.b32.xlu0 %v183, 32
        %v1587 = vpop.permute.xlu0 %1586
        %1588 = vrot.lane.b32.xlu0 %v184, 32
        %v1589 = vpop.permute.xlu0 %1588
        %1590 = vrot.lane.b32.xlu0 %v185, 32
        %v1591 = vpop.permute.xlu0 %1590
        %1592 = vrot.lane.b32.xlu0 %v186, 32
        %v1593 = vpop.permute.xlu0 %1592
        %1594 = vrot.lane.b32.xlu0 %v187, 32
        %v1595 = vpop.permute.xlu0 %1594
        %1596 = vrot.lane.b32.xlu0 %v188, 32
        %v1597 = vpop.permute.xlu0 %1596
        %1598 = vrot.lane.b32.xlu0 %v189, 32
        %v1599 = vpop.permute.xlu0 %1598
        %1600 = vrot.lane.b32.xlu0 %v190, 32
        %v1601 = vpop.permute.xlu0 %1600
        %1602 = vrot.lane.b32.xlu0 %v191, 32
        %v1603 = vpop.permute.xlu0 %1602
        %1604 = vrot.lane.b32.xlu0 %v192, 32
        %v1605 = vpop.permute.xlu0 %1604
        %1606 = vrot.lane.b32.xlu0 %v193, 32
        %v1607 = vpop.permute.xlu0 %1606
        %1608 = vrot.lane.b32.xlu0 %v194, 32
        %v1609 = vpop.permute.xlu0 %1608
        %1610 = vrot.lane.b32.xlu0 %v195, 32
        %v1611 = vpop.permute.xlu0 %1610
        %vm1660 = vcmask 294146
        %1661 = vst.msk [vmem:[#allocation2 - $0x2] sm:$0xfc] %vm1660, %v1517
        %vm1662 = vcmask 294144
        %1663 = vst.msk [vmem:[#allocation2 + $0x6] sm:$0xff] %vm1662, %v1519
        %vm1664 = vcmask 288000
        %1665 = vst.msk [vmem:[#allocation2 + $0xe] sm:$0x3] %vm1664, %v1521
        %1666 = vst.msk [vmem:[#allocation2 + $0xe] sm:$0xfc] %vm1660, %v1523
        %1667 = vst.msk [vmem:[#allocation2 + $0x16] sm:$0xff] %vm1662, %v1525
        %1668 = vst.msk [vmem:[#allocation2 + $0x1e] sm:$0x3] %vm1664, %v1527
        %1669 = vst.msk [vmem:[#allocation2 + $0x1e] sm:$0xfc] %vm1660, %v1529
        %1670 = vst.msk [vmem:[#allocation2 + $0x26] sm:$0xff] %vm1662, %v1531
        %1671 = vst.msk [vmem:[#allocation2 + $0x2e] sm:$0x3] %vm1664, %v1533
        %1672 = vst.msk [vmem:[#allocation2 + $0x2e] sm:$0xfc] %vm1660, %v1535
        %1673 = vst.msk [vmem:[#allocation2 + $0x36] sm:$0xff] %vm1662, %v1537
        %1674 = vst.msk [vmem:[#allocation2 + $0x3e] sm:$0x3] %vm1664, %v1539
        %1675 = vst.msk [vmem:[#allocation2 + $0x3e] sm:$0xfc] %vm1660, %v1541
        %1676 = vst.msk [vmem:[#allocation2 + $0x46] sm:$0xff] %vm1662, %v1543
        %1677 = vst.msk [vmem:[#allocation2 + $0x4e] sm:$0x3] %vm1664, %v1545
        %1678 = vst.msk [vmem:[#allocation2 + $0x4e] sm:$0xfc] %vm1660, %v1547
        %1679 = vst.msk [vmem:[#allocation2 + $0x56] sm:$0xff] %vm1662, %v1549
        %1680 = vst.msk [vmem:[#allocation2 + $0x5e] sm:$0x3] %vm1664, %v1551
        %1681 = vst.msk [vmem:[#allocation2 + $0x5e] sm:$0xfc] %vm1660, %v1553
        %1682 = vst.msk [vmem:[#allocation2 + $0x66] sm:$0xff] %vm1662, %v1555
        %1683 = vst.msk [vmem:[#allocation2 + $0x6e] sm:$0x3] %vm1664, %v1557
        %1684 = vst.msk [vmem:[#allocation2 + $0x6e] sm:$0xfc] %vm1660, %v1559
        %1685 = vst.msk [vmem:[#allocation2 + $0x76] sm:$0xff] %vm1662, %v1561
        %1686 = vst.msk [vmem:[#allocation2 + $0x7e] sm:$0x3] %vm1664, %v1563
        %1687 = vst.msk [vmem:[#allocation2 + $0x7e] sm:$0xfc] %vm1660, %v1565
        %1688 = vst.msk [vmem:[#allocation2 + $0x86] sm:$0xff] %vm1662, %v1567
        %1689 = vst.msk [vmem:[#allocation2 + $0x8e] sm:$0x3] %vm1664, %v1569
        %1690 = vst.msk [vmem:[#allocation2 + $0x8e] sm:$0xfc] %vm1660, %v1571
        %1691 = vst.msk [vmem:[#allocation2 + $0x96] sm:$0xff] %vm1662, %v1573
        %1692 = vst.msk [vmem:[#allocation2 + $0x9e] sm:$0x3] %vm1664, %v1575
        %1693 = vst.msk [vmem:[#allocation2 + $0x9e] sm:$0xfc] %vm1660, %v1577
        %1694 = vst.msk [vmem:[#allocation2 + $0xa6] sm:$0xff] %vm1662, %v1579
        %1695 = vst.msk [vmem:[#allocation2 + $0xae] sm:$0x3] %vm1664, %v1581
        %1696 = vst.msk [vmem:[#allocation2 + $0xae] sm:$0xfc] %vm1660, %v1583
        %1697 = vst.msk [vmem:[#allocation2 + $0xb6] sm:$0xff] %vm1662, %v1585
        %1698 = vst.msk [vmem:[#allocation2 + $0xbe] sm:$0x3] %vm1664, %v1587
        %1699 = vst.msk [vmem:[#allocation2 + $0xbe] sm:$0xfc] %vm1660, %v1589
        %1700 = vst.msk [vmem:[#allocation2 + $0xc6] sm:$0xff] %vm1662, %v1591
        %1701 = vst.msk [vmem:[#allocation2 + $0xce] sm:$0x3] %vm1664, %v1593
        %1702 = vst.msk [vmem:[#allocation2 + $0xce] sm:$0xfc] %vm1660, %v1595
        %1703 = vst.msk [vmem:[#allocation2 + $0xd6] sm:$0xff] %vm1662, %v1597
        %1704 = vst.msk [vmem:[#allocation2 + $0xde] sm:$0x3] %vm1664, %v1599
        %1705 = vst.msk [vmem:[#allocation2 + $0xde] sm:$0xfc] %vm1660, %v1601
        %1706 = vst.msk [vmem:[#allocation2 + $0xe6] sm:$0xff] %vm1662, %v1603
        %1707 = vst.msk [vmem:[#allocation2 + $0xee] sm:$0x3] %vm1664, %v1605
        %1708 = vst.msk [vmem:[#allocation2 + $0xee] sm:$0xfc] %vm1660, %v1607
        %1709 = vst.msk [vmem:[#allocation2 + $0xf6] sm:$0xff] %vm1662, %v1609
        %1710 = vst.msk [vmem:[#allocation2 + $0xfe] sm:$0x3] %vm1664, %v1611
        %v1711 = vld [vmem:[#allocation2] sm:$0xff]
        %v1712 = vld [vmem:[#allocation2 + $0x8] sm:$0xff]
        %v1713 = vld [vmem:[#allocation2 + $0x10] sm:$0xff]
        %v1714 = vld [vmem:[#allocation2 + $0x18] sm:$0xff]
        %v1715 = vld [vmem:[#allocation2 + $0x20] sm:$0xff]
        %v1716 = vld [vmem:[#allocation2 + $0x28] sm:$0xff]
        %v1717 = vld [vmem:[#allocation2 + $0x30] sm:$0xff]
        %v1718 = vld [vmem:[#allocation2 + $0x38] sm:$0xff]
        %v1719 = vld [vmem:[#allocation2 + $0x40] sm:$0xff]
        %v1720 = vld [vmem:[#allocation2 + $0x48] sm:$0xff]
        %v1721 = vld [vmem:[#allocation2 + $0x50] sm:$0xff]
        %v1722 = vld [vmem:[#allocation2 + $0x58] sm:$0xff]
        %v1723 = vld [vmem:[#allocation2 + $0x60] sm:$0xff]
        %v1724 = vld [vmem:[#allocation2 + $0x68] sm:$0xff]
        %v1725 = vld [vmem:[#allocation2 + $0x70] sm:$0xff]
        %v1726 = vld [vmem:[#allocation2 + $0x78] sm:$0xff]
        %v1727 = vld [vmem:[#allocation2 + $0x80] sm:$0xff]
        %v1728 = vld [vmem:[#allocation2 + $0x88] sm:$0xff]
        %v1729 = vld [vmem:[#allocation2 + $0x90] sm:$0xff]
        %v1730 = vld [vmem:[#allocation2 + $0x98] sm:$0xff]
        %v1731 = vld [vmem:[#allocation2 + $0xa0] sm:$0xff]
        %v1732 = vld [vmem:[#allocation2 + $0xa8] sm:$0xff]
        %v1733 = vld [vmem:[#allocation2 + $0xb0] sm:$0xff]
        %v1734 = vld [vmem:[#allocation2 + $0xb8] sm:$0xff]
        %v1735 = vld [vmem:[#allocation2 + $0xc0] sm:$0xff]
        %v1736 = vld [vmem:[#allocation2 + $0xc8] sm:$0xff]
        %v1737 = vld [vmem:[#allocation2 + $0xd0] sm:$0xff]
        %v1738 = vld [vmem:[#allocation2 + $0xd8] sm:$0xff]
        %v1739 = vld [vmem:[#allocation2 + $0xe0] sm:$0xff]
        %v1740 = vld [vmem:[#allocation2 + $0xe8] sm:$0xff]
        %v1741 = vld [vmem:[#allocation2 + $0xf0] sm:$0xff]
        %v1742 = vld [vmem:[#allocation2 + $0xf8] sm:$0xff]
        %v1743 = vld [vmem:[%s1] sm:$0xff]
        %vm1744 = vcmask 293888
        %v1746 = vsel %vm1744, %v1743, 0
        %v1749 = vsel %vm1744, %v1711, 0
        %v1752 = vsel %vm1744, %v1712, 0
        %v1755 = vsel %vm1744, %v1713, 0
        %v1758 = vsel %vm1744, %v1714, 0
        %v1761 = vsel %vm1744, %v1715, 0
        %v1764 = vsel %vm1744, %v1716, 0
        %v1767 = vsel %vm1744, %v1717, 0
        %v1770 = vsel %vm1744, %v1718, 0
        %v1773 = vsel %vm1744, %v1719, 0
        %v1776 = vsel %vm1744, %v1720, 0
        %v1779 = vsel %vm1744, %v1721, 0
        %v1782 = vsel %vm1744, %v1722, 0
        %v1785 = vsel %vm1744, %v1723, 0
        %v1788 = vsel %vm1744, %v1724, 0
        %v1791 = vsel %vm1744, %v1725, 0
        %v1794 = vsel %vm1744, %v1726, 0
        %v1797 = vsel %vm1744, %v1727, 0
        %v1800 = vsel %vm1744, %v1728, 0
        %v1803 = vsel %vm1744, %v1729, 0
        %v1806 = vsel %vm1744, %v1730, 0
        %v1809 = vsel %vm1744, %v1731, 0
        %v1812 = vsel %vm1744, %v1732, 0
        %v1815 = vsel %vm1744, %v1733, 0
        %v1818 = vsel %vm1744, %v1734, 0
        %v1821 = vsel %vm1744, %v1735, 0
        %v1824 = vsel %vm1744, %v1736, 0
        %v1827 = vsel %vm1744, %v1737, 0
        %v1830 = vsel %vm1744, %v1738, 0
        %v1833 = vsel %vm1744, %v1739, 0
        %v1836 = vsel %vm1744, %v1740, 0
        %v1839 = vsel %vm1744, %v1741, 0
        %v1842 = vsel %vm1744, %v1742, 0
        %1844 = vmatprep.subr.mxu0 0.0
        %1845 = vmatpush1.xpose.msra.mxu0 %v1749
        %1846 = vmatprep.subr.mxu0 0.0
        %1847 = vmatpush1.xpose.msra.mxu0 %v1752
        %1848 = vmatprep.subr.mxu0 0.0
        %1849 = vmatpush1.xpose.msra.mxu0 %v1755
        %1850 = vmatprep.subr.mxu0 0.0
        %1851 = vmatpush1.xpose.msra.mxu0 %v1758
        %1852 = vmatprep.subr.mxu0 0.0
        %1853 = vmatpush1.xpose.msra.mxu0 %v1761
        %1854 = vmatprep.subr.mxu0 0.0
        %1855 = vmatpush1.xpose.msra.mxu0 %v1764
        %1856 = vmatprep.subr.mxu0 0.0
        %1857 = vmatpush1.xpose.msra.mxu0 %v1767
        %1858 = vmatprep.subr.mxu0 0.0
        %1859 = vmatpush1.xpose.msra.mxu0 %v1770
        %1860 = vmatprep.subr.mxu0 0.0
        %1861 = vmatpush1.xpose.msra.mxu0 %v1773
        %1862 = vmatprep.subr.mxu0 0.0
        %1863 = vmatpush1.xpose.msra.mxu0 %v1776
        %1864 = vmatprep.subr.mxu0 0.0
        %1865 = vmatpush1.xpose.msra.mxu0 %v1779
        %1866 = vmatprep.subr.mxu0 0.0
        %1867 = vmatpush1.xpose.msra.mxu0 %v1782
        %1868 = vmatprep.subr.mxu0 0.0
        %1869 = vmatpush1.xpose.msra.mxu0 %v1785
        %1870 = vmatprep.subr.mxu0 0.0
        %1871 = vmatpush1.xpose.msra.mxu0 %v1788
        %1872 = vmatprep.subr.mxu0 0.0
        %1873 = vmatpush1.xpose.msra.mxu0 %v1791
        %1874 = vmatprep.subr.mxu0 0.0
        %1875 = vmatpush1.xpose.msra.mxu0 %v1794
        %1876 = vmatprep.subr.mxu0 0.0
        %1877 = vmatpush1.xpose.msra.mxu0 %v1797
        %1878 = vmatprep.subr.mxu0 0.0
        %1879 = vmatpush1.xpose.msra.mxu0 %v1800
        %1880 = vmatprep.subr.mxu0 0.0
        %1881 = vmatpush1.xpose.msra.mxu0 %v1803
        %1882 = vmatprep.subr.mxu0 0.0
        %1883 = vmatpush1.xpose.msra.mxu0 %v1806
        %1884 = vmatprep.subr.mxu0 0.0
        %1885 = vmatpush1.xpose.msra.mxu0 %v1809
        %1886 = vmatprep.subr.mxu0 0.0
        %1887 = vmatpush1.xpose.msra.mxu0 %v1812
        %1888 = vmatprep.subr.mxu0 0.0
        %1889 = vmatpush1.xpose.msra.mxu0 %v1815
        %1890 = vmatprep.subr.mxu0 0.0
        %1891 = vmatpush1.xpose.msra.mxu0 %v1818
        %1892 = vmatprep.subr.mxu0 0.0
        %1893 = vmatpush1.xpose.msra.mxu0 %v1821
        %1894 = vmatprep.subr.mxu0 0.0
        %1895 = vmatpush1.xpose.msra.mxu0 %v1824
        %1896 = vmatprep.subr.mxu0 0.0
        %1897 = vmatpush1.xpose.msra.mxu0 %v1827
        %1898 = vmatprep.subr.mxu0 0.0
        %1899 = vmatpush1.xpose.msra.mxu0 %v1830
        %1900 = vmatprep.subr.mxu0 0.0
        %1901 = vmatpush1.xpose.msra.mxu0 %v1833
        %1902 = vmatprep.subr.mxu0 0.0
        %1903 = vmatpush1.xpose.msra.mxu0 %v1836
        %1904 = vmatprep.subr.mxu0 0.0
        %1905 = vmatpush1.xpose.msra.mxu0 %v1839
        %1906 = vmatprep.subr.mxu0 0.0
        %1907 = vmatpush1.xpose.msra.mxu0 %v1842
        %1908 = vmatprep.mubr.f32.mxu0 0.0
        %1909 = vmatmul.mubr.f32.gmra.mrb[0].mxu0 %v1746
        %v1910 = vpop.f32.mrb[0].mxu0
        %v1911 = vadd.f32 0.0, %v1910
        %v1912 = vpop.f32.mrb[0].mxu0
        %v1913 = vadd.f32 0.0, %v1912
        %1914 = vdwg.mxu0
        %1915 = vst [vmem:[%s136] sm:$0xff] %v1911
        %1916 = vst [vmem:[%s136 + $0x8] sm:$0xff] %v1913
        %s1917 = sand.u32 %s71, 1
        %s1918 = scalar_lea.sflag [#allocation4], %s1917
        %s1919 = sand.u32 %s71, 1
        %s1920 = smul.addr %s1919, 16
        %s1921 = scalar_lea.vmem [#allocation3], %s1920
        // Predicated region
        $region29: #{tpu_custom_call.1} parent=27 // pred_check
          %p1922 = pneg %p81
        $region30: #{tpu_custom_call.1} parent=27 // pred_check_branch
          %1924 = sbr.rel (%p1922) target = $region32
        $region31: #{tpu_custom_call.1} parent=27 // pred_region
          %s1926 = ssub.s32 256, 256
          %1927 = vsyncadd %s1918, %s1926
          %s1928 = smul.addr %s16, 2
          %s1929 = smul.addr %s1928, 128
          %s1930 = scalar_lea.hbm %s2, %s1929
          %s1932 = sshll.u32 %s1921, 4
          %s1933 = int_to_ptr.vmem [resolvable:$true] %s1932
          %1935 = dma.vmem_to_hbm [thread:$0]  %s1933, 256, %s1930, %s1918
        $region32: #{tpu_custom_call.1} parent=27 // pred_fallthru
          _
      $region28: #{tpu_custom_call.1} parent=5 // pred_fallthru
        _
      %p1936 = scmp.le.s32.totalorder 2, %s11
      // Predicated region
      $region33: #{tpu_custom_call.1} parent=5 // pred_check
        %p1937 = pneg %p1936
      $region34: #{tpu_custom_call.1} parent=5 // pred_check_branch
        %1939 = sbr.rel (%p1937) target = $region36
      $region35: #{tpu_custom_call.1} parent=5 // pred_region
        %s1940 = ssub.s32 %s11, 2
        // Predicated region
        $region37: #{tpu_custom_call.1} parent=35 // pred_check
          %p1941 = pneg %p87
        $region38: #{tpu_custom_call.1} parent=35 // pred_check_branch
          %1943 = sbr.rel (%p1941) target = $region40
        $region39: #{tpu_custom_call.1} parent=35 // pred_region
          %s1944 = sand.u32 %s72, 1
          %s1945 = scalar_lea.sflag [#allocation4], %s1944
          %s1946 = sand.u32 %s72, 1
          %s1947 = smul.addr %s1946, 16
          %s1948 = scalar_lea.vmem [#allocation3], %s1947
          %1949 = dma.done %s1945, 256
        $region40: #{tpu_custom_call.1} parent=35 // pred_fallthru
          _
      $region36: #{tpu_custom_call.1} parent=5 // pred_fallthru
        _
    $region6: #{tpu_custom_call.1} parent=1 // loop_footer
      %s15 = sadd.s32 1, %s11
    $region7: #{tpu_custom_call.1} parent=1 // loop_footer_branch
      %10 = sbr.rel target = $region3
    $region8: #{tpu_custom_call.1} parent=1 // loop_exit
      _
    %1950 = vsyncpa [#allocation4], 1
    %s1951 = scalar_lea.sflag [#allocation4], 1
    %1952 = vsyncpa %s1951, 1

</llo_original>
